<compile_context>
chip_gen: v7x
topology: tpu7x:2x2x1
jax: 0.10.0
libtpu: 0.0.40
codegen_flags: <defaults>
</compile_context>

<pallas_src>
import jax
import jax.numpy as jnp
from jax.experimental import pallas as pl
from jax.experimental.pallas import tpu as pltpu

EPS = 1e-5
H1, H2, HB = 256, 512, 256        # trunk hidden sizes / branch hidden size
OUT_PAD = 128                     # lane-dense padded output width
TB_MAX = 1024                     # max batch-tile rows (multiple of 16; fits 32 MiB VMEM)

# Row layout of the packed per-feature vector array (single small VMEM input).
_R_B1, _R_B2, _R_BBR, _R_WV2, _R_BV2, _R_BA2 = 0, 1, 2, 3, 4, 5
_VEC_ROWS = 8                     # padded to a multiple of 8 sublanes


def _norm(h):
    """LayerNorm normalization only (affine folded into downstream weights).
    Single-pass variance: var = E[h^2] - mu^2 (halves the cross-lane reduces)."""
    mu = jnp.mean(h, axis=-1, keepdims=True)
    ms = jnp.mean(h * h, axis=-1, keepdims=True)
    return (h - mu) * jax.lax.rsqrt(ms - mu * mu + EPS)


def dueling_dqn_kernel(x_ref, w1_ref, w2_ref, wbr_ref, wa2_ref, vecs_ref, q_ref):
    f32, bf16 = jnp.float32, jnp.bfloat16

    # ---- unpack the packed per-feature vectors (static slices of one ref)
    b1 = vecs_ref[_R_B1:_R_B1 + 1, 0:H1]            # trunk bias 1
    b2 = vecs_ref[_R_B2:_R_B2 + 1, 0:H2]            # trunk bias 2 (LN1 affine folded)
    bbr = vecs_ref[_R_BBR:_R_BBR + 1, 0:2 * HB]     # [bv1 | ba1] (LN2 affine folded)
    wv2 = vecs_ref[_R_WV2:_R_WV2 + 1, 0:HB]         # value-head row (LNv affine folded)
    bv2 = vecs_ref[_R_BV2:_R_BV2 + 1, 0:1]
    ba2 = vecs_ref[_R_BA2:_R_BA2 + 1, 0:OUT_PAD]    # adv-head bias (affine + mean folded)

    x = x_ref[...]                                  # already bf16

    # ---- feature trunk: Linear -> ReLU -> LN -> Linear -> ReLU -> LN
    h = jnp.dot(x, w1_ref[...], preferred_element_type=f32) + b1
    h = _norm(jnp.maximum(h, 0.0))

    h = jnp.dot(h.astype(bf16), w2_ref[...], preferred_element_type=f32) + b2
    feats = _norm(jnp.maximum(h, 0.0))

    # ---- fused value|advantage first layers: one (TB,512)@(512,512) matmul
    va = jnp.dot(feats.astype(bf16), wbr_ref[...], preferred_element_type=f32) + bbr
    va = jnp.maximum(va, 0.0)
    v = _norm(va[:, 0:HB])
    # TODO(synk): Dropout(0.5) on the advantage branch is identity (eval mode);
    # training-mode masking would use pltpu.prng_seed + pltpu.prng_random_bits.
    a = _norm(va[:, HB:2 * HB])

    # ---- value head (256 -> 1) as a lane reduction (skip an N=1 MXU matmul)
    values = jnp.sum(v * wv2, axis=-1, keepdims=True) + bv2              # (TB, 1)

    # ---- advantage head, lane-dense; mean subtraction already folded into wa2/ba2
    adv_c = jnp.dot(a.astype(bf16), wa2_ref[...], preferred_element_type=f32) + ba2

    q_ref[...] = values + adv_c                                          # (TB, 128)


def dueling_dqn_forward(x, kernel_params, out_dim, *, core_parallel=False):
    """x: (B, input_dim) f32.  kernel_params: output of pack_params()."""
    w1, w2, wbr, wa2_pad, vecs = kernel_params
    B, in_dim = x.shape

    # batch tile: whole batch if it fits, else TB_MAX (mult. of 16; last block clipped)
    tb = B if B <= TB_MAX else TB_MAX
    n_tiles = pl.cdiv(B, tb)

    x_bf = x.astype(jnp.bfloat16)   # halve streamed-input HBM traffic / drop in-kernel cast

    const2 = lambda i: (0, 0)       # weights: fetched once, resident across grid steps
    # On v7x, core_parallel=True shards the batch grid across both TensorCores.
    batch_sem = pltpu.CORE_PARALLEL if core_parallel else "parallel"
    q_pad = pl.pallas_call(
        dueling_dqn_kernel,
        out_shape=jax.ShapeDtypeStruct((B, OUT_PAD), jnp.float32),
        grid=(n_tiles,),
        in_specs=[
            pl.BlockSpec((tb, in_dim), lambda i: (i, 0)),   # activation tile (pipelined)
            pl.BlockSpec(w1.shape, const2),
            pl.BlockSpec(w2.shape, const2),
            pl.BlockSpec(wbr.shape, const2),
            pl.BlockSpec(wa2_pad.shape, const2),
            pl.BlockSpec(vecs.shape, const2),
        ],
        out_specs=pl.BlockSpec((tb, OUT_PAD), lambda i: (i, 0)),
        compiler_params=pltpu.CompilerParams(
            dimension_semantics=(batch_sem,),
            vmem_limit_bytes=32 << 20),   # raises v5e default (16 MiB), safe on v7x (64 MiB)
    )(x_bf, w1, w2, wbr, wa2_pad, vecs)
    return q_pad[:, :out_dim]


def init_params(key, input_dim, output_dim):
    """PyTorch-equivalent params. Weights (in,out) f32; vectors (1,out) f32."""
    ks = jax.random.split(key, 6)

    def lin(k, fan_in, fan_out):
        kw, kb = jax.random.split(k)
        s = 1.0 / jnp.sqrt(fan_in)
        w = jax.random.uniform(kw, (fan_in, fan_out), jnp.float32, -s, s)
        b = jax.random.uniform(kb, (1, fan_out), jnp.float32, -s, s)
        return w, b

    def ln(d):
        return jnp.ones((1, d), jnp.float32), jnp.zeros((1, d), jnp.float32)

    w1, b1 = lin(ks[0], input_dim, H1);  g1, be1 = ln(H1)
    w2, b2 = lin(ks[1], H1, H2);         g2, be2 = ln(H2)
    wv1, bv1 = lin(ks[2], H2, HB);       gv, bev = ln(HB)
    wv2, bv2 = lin(ks[3], HB, 1)
    wa1, ba1 = lin(ks[4], H2, HB);       ga, bea = ln(HB)
    wa2, ba2 = lin(ks[5], HB, output_dim)
    return (w1, b1, g1, be1, w2, b2, g2, be2,
            wv1, bv1, gv, bev, wv2, bv2,
            wa1, ba1, ga, bea, wa2, ba2)


def pack_params(params, output_dim):
    """Kernel-side params: bf16 weights with all LN affines + the advantage-mean
    folded in (folds done in f32), fused branch weight, lane-padded advantage head,
    and one packed f32 array holding the remaining small per-feature vectors."""
    (w1, b1, g1, be1, w2, b2, g2, be2,
     wv1, bv1, gv, bev, wv2, bv2,
     wa1, ba1, ga, bea, wa2, ba2) = params

    # Fold LN1 affine (g1, be1) into the second trunk linear.
    w2f = g1[0][:, None] * w2                                   # (256, 512)
    b2f = be1 @ w2 + b2                                         # (1, 512)

    # Fused value|advantage first layers; fold LN2 affine (g2, be2) into them.
    wbr = jnp.concatenate([wv1, wa1], axis=1)                   # (512, 512)
    bbr = jnp.concatenate([bv1, ba1], axis=1)                   # (1, 512)
    wbrf = g2[0][:, None] * wbr
    bbrf = be2 @ wbr + bbr

    # Fold value-branch LN affine (gv, bev) into the (256 -> 1) value head.
    wv2f = gv[0] * wv2[:, 0]                                    # (256,)
    bv2f = jnp.sum(bev[0] * wv2[:, 0]) + bv2[0, 0]              # scalar

    # Fold advantage-branch LN affine (ga, bea) into the head, then fold the
    # advantage-mean subtraction (over the TRUE out_dim columns) into wa2/ba2.
    wa2f = ga[0][:, None] * wa2                                 # (256, out_dim)
    ba2f = bea @ wa2 + ba2                                      # (1, out_dim)
    wa2c = wa2f - jnp.mean(wa2f, axis=1, keepdims=True)
    ba2c = ba2f - jnp.mean(ba2f, axis=1, keepdims=True)

    wa2_pad = jnp.zeros((HB, OUT_PAD), jnp.float32).at[:, :output_dim].set(wa2c)
    ba2_pad = jnp.zeros((OUT_PAD,), jnp.float32).at[:output_dim].set(ba2c[0])

    vecs = jnp.zeros((_VEC_ROWS, H2), jnp.float32)
    vecs = vecs.at[_R_B1, :H1].set(b1[0])
    vecs = vecs.at[_R_B2, :].set(b2f[0])
    vecs = vecs.at[_R_BBR, :].set(bbrf[0])
    vecs = vecs.at[_R_WV2, :HB].set(wv2f)
    vecs = vecs.at[_R_BV2, 0].set(bv2f)
    vecs = vecs.at[_R_BA2, :OUT_PAD].set(ba2_pad)

    bf = lambda w: w.astype(jnp.bfloat16)
    return (bf(w1), bf(w2f), bf(wbrf), bf(wa2_pad), vecs)


def reference_forward(x, params):
    """Pure-JAX reference mirroring the PyTorch module structure
    (bf16 matmul inputs, f32 accumulation, unfolded LayerNorm affine)."""
    (w1, b1, g1, be1, w2, b2, g2, be2,
     wv1, bv1, gv, bev, wv2, bv2,
     wa1, ba1, ga, bea, wa2, ba2) = params
    bf16, f32 = jnp.bfloat16, jnp.float32

    def dotbf(a, w):
        return jnp.dot(a.astype(bf16), w.astype(bf16), preferred_element_type=f32)

    def ln(h, g, be):
        mu = jnp.mean(h, axis=-1, keepdims=True)
        var = jnp.mean((h - mu) ** 2, axis=-1, keepdims=True)
        return (h - mu) * jax.lax.rsqrt(var + EPS) * g + be

    h = ln(jnp.maximum(dotbf(x, w1) + b1, 0.0), g1, be1)
    f = ln(jnp.maximum(dotbf(h, w2) + b2, 0.0), g2, be2)

    v = ln(jnp.maximum(dotbf(f, wv1) + bv1, 0.0), gv, bev)
    values = v @ wv2 + bv2

    a = ln(jnp.maximum(dotbf(f, wa1) + ba1, 0.0), ga, bea)      # Dropout = identity (eval)
    adv = dotbf(a, wa2) + ba2

    return values + (adv - jnp.mean(adv, axis=1, keepdims=True))


if __name__ == "__main__":
    key = jax.random.PRNGKey(0)
    kx, kp = jax.random.split(key)

    batch, input_dim, output_dim = 8, 128, 16
    x = jax.random.normal(kx, (batch, input_dim), jnp.float32)

    params = init_params(kp, input_dim, output_dim)
    kparams = pack_params(params, output_dim)

    q = dueling_dqn_forward(x, kparams, output_dim)
    q = jax.block_until_ready(q)

    q_ref = reference_forward(x, params)
    assert q.shape == (batch, output_dim)
    assert jnp.allclose(q, q_ref, atol=2e-2, rtol=2e-2), "mismatch vs pure-JAX reference"

    print("KERNEL_OK")
</pallas_src>

<mosaic_0001>
module attributes {stable_mosaic.version = 11 : i64} {
  func.func @dueling_dqn_kernel(%arg0: i32, %arg1: memref<8x128xbf16, #tpu.memory_space<vmem>>, %arg2: memref<128x256xbf16, #tpu.memory_space<vmem>>, %arg3: memref<256x512xbf16, #tpu.memory_space<vmem>>, %arg4: memref<512x512xbf16, #tpu.memory_space<vmem>>, %arg5: memref<256x128xbf16, #tpu.memory_space<vmem>>, %arg6: memref<8x512xf32, #tpu.memory_space<vmem>>, %arg7: memref<8x128xf32, #tpu.memory_space<vmem>>) attributes {dimension_semantics = [#tpu.dimension_semantics<parallel>], iteration_bounds = array<i64: 1>, scalar_prefetch = 0 : i64, scratch_operands = 0 : i64, tpu.core_type = #tpu.core_type<tc>, window_params = [{transform_indices = @transform_0, window_bounds = array<i64: 8, 128>}, {pipeline_mode = #tpu.pipeline_mode<synchronous>, transform_indices = @transform_1, window_bounds = array<i64: 128, 256>}, {pipeline_mode = #tpu.pipeline_mode<synchronous>, transform_indices = @transform_2, window_bounds = array<i64: 256, 512>}, {pipeline_mode = #tpu.pipeline_mode<synchronous>, transform_indices = @transform_3, window_bounds = array<i64: 512, 512>}, {pipeline_mode = #tpu.pipeline_mode<synchronous>, transform_indices = @transform_4, window_bounds = array<i64: 256, 128>}, {pipeline_mode = #tpu.pipeline_mode<synchronous>, transform_indices = @transform_5, window_bounds = array<i64: 8, 512>}, {transform_indices = @transform_6, window_bounds = array<i64: 8, 128>}]} {
    %c0 = arith.constant 0 : index
    %c0_0 = arith.constant 0 : index
    %0 = vector.load %arg6[%c0, %c0_0] : memref<8x512xf32, #tpu.memory_space<vmem>>, vector<1x256xf32>
    %c1 = arith.constant 1 : index
    %c0_1 = arith.constant 0 : index
    %1 = vector.load %arg6[%c1, %c0_1] : memref<8x512xf32, #tpu.memory_space<vmem>>, vector<1x512xf32>
    %c2 = arith.constant 2 : index
    %c0_2 = arith.constant 0 : index
    %2 = vector.load %arg6[%c2, %c0_2] : memref<8x512xf32, #tpu.memory_space<vmem>>, vector<1x512xf32>
    %c3 = arith.constant 3 : index
    %c0_3 = arith.constant 0 : index
    %3 = vector.load %arg6[%c3, %c0_3] : memref<8x512xf32, #tpu.memory_space<vmem>>, vector<1x256xf32>
    %c4 = arith.constant 4 : index
    %c0_4 = arith.constant 0 : index
    %4 = vector.load %arg6[%c4, %c0_4] : memref<8x512xf32, #tpu.memory_space<vmem>>, vector<1x1xf32>
    %c5 = arith.constant 5 : index
    %c0_5 = arith.constant 0 : index
    %5 = vector.load %arg6[%c5, %c0_5] : memref<8x512xf32, #tpu.memory_space<vmem>>, vector<1x128xf32>
    %c0_6 = arith.constant 0 : index
    %c0_7 = arith.constant 0 : index
    %6 = vector.load %arg1[%c0_6, %c0_7] : memref<8x128xbf16, #tpu.memory_space<vmem>>, vector<8x128xbf16>
    %c0_8 = arith.constant 0 : index
    %c0_9 = arith.constant 0 : index
    %7 = vector.load %arg2[%c0_8, %c0_9] : memref<128x256xbf16, #tpu.memory_space<vmem>>, vector<128x256xbf16>
    %cst = arith.constant dense<0.000000e+00> : vector<8x256xf32>
    %8 = tpu.matmul %6, %7, %cst {dimension_numbers = #tpu.dot_dimension_numbers<[1], [0], [0], [1], [0, 0, 1, 1], [], []>} : vector<8x128xbf16>, vector<128x256xbf16>, vector<8x256xf32> -> vector<8x256xf32>
    %9 = vector.broadcast %0 : vector<1x256xf32> to vector<8x256xf32>
    %10 = arith.addf %8, %9 : vector<8x256xf32>
    %cst_10 = arith.constant 0.000000e+00 : f32
    %11 = vector.broadcast %cst_10 : f32 to vector<8x256xf32>
    %12 = arith.maximumf %10, %11 : vector<8x256xf32>
    %cst_11 = arith.constant dense<0.000000e+00> : vector<8xf32>
    %13 = vector.multi_reduction <add>, %12, %cst_11 [1] : vector<8x256xf32> to vector<8xf32>
    %14 = vector.shape_cast %13 : vector<8xf32> to vector<8x1xf32>
    %cst_12 = arith.constant 2.560000e+02 : f32
    %15 = vector.broadcast %cst_12 : f32 to vector<8x1xf32>
    %16 = arith.divf %14, %15 : vector<8x1xf32>
    %17 = arith.mulf %12, %12 : vector<8x256xf32>
    %cst_13 = arith.constant dense<0.000000e+00> : vector<8xf32>
    %18 = vector.multi_reduction <add>, %17, %cst_13 [1] : vector<8x256xf32> to vector<8xf32>
    %19 = vector.shape_cast %18 : vector<8xf32> to vector<8x1xf32>
    %cst_14 = arith.constant 2.560000e+02 : f32
    %20 = vector.broadcast %cst_14 : f32 to vector<8x1xf32>
    %21 = arith.divf %19, %20 : vector<8x1xf32>
    %22 = vector.broadcast %16 : vector<8x1xf32> to vector<8x256xf32>
    %23 = arith.subf %12, %22 : vector<8x256xf32>
    %24 = arith.mulf %16, %16 : vector<8x1xf32>
    %25 = arith.subf %21, %24 : vector<8x1xf32>
    %cst_15 = arith.constant 9.99999974E-6 : f32
    %26 = vector.broadcast %cst_15 : f32 to vector<8x1xf32>
    %27 = arith.addf %25, %26 : vector<8x1xf32>
    %28 = math.rsqrt %27 : vector<8x1xf32>
    %29 = vector.broadcast %28 : vector<8x1xf32> to vector<8x256xf32>
    %30 = arith.mulf %23, %29 : vector<8x256xf32>
    %31 = arith.truncf %30 : vector<8x256xf32> to vector<8x256xbf16>
    %c0_16 = arith.constant 0 : index
    %c0_17 = arith.constant 0 : index
    %32 = vector.load %arg3[%c0_16, %c0_17] : memref<256x512xbf16, #tpu.memory_space<vmem>>, vector<256x512xbf16>
    %cst_18 = arith.constant dense<0.000000e+00> : vector<8x512xf32>
    %33 = tpu.matmul %31, %32, %cst_18 {dimension_numbers = #tpu.dot_dimension_numbers<[1], [0], [0], [1], [0, 0, 1, 1], [], []>} : vector<8x256xbf16>, vector<256x512xbf16>, vector<8x512xf32> -> vector<8x512xf32>
    %34 = vector.broadcast %1 : vector<1x512xf32> to vector<8x512xf32>
    %35 = arith.addf %33, %34 : vector<8x512xf32>
    %cst_19 = arith.constant 0.000000e+00 : f32
    %36 = vector.broadcast %cst_19 : f32 to vector<8x512xf32>
    %37 = arith.maximumf %35, %36 : vector<8x512xf32>
    %cst_20 = arith.constant dense<0.000000e+00> : vector<8xf32>
    %38 = vector.multi_reduction <add>, %37, %cst_20 [1] : vector<8x512xf32> to vector<8xf32>
    %39 = vector.shape_cast %38 : vector<8xf32> to vector<8x1xf32>
    %cst_21 = arith.constant 5.120000e+02 : f32
    %40 = vector.broadcast %cst_21 : f32 to vector<8x1xf32>
    %41 = arith.divf %39, %40 : vector<8x1xf32>
    %42 = arith.mulf %37, %37 : vector<8x512xf32>
    %cst_22 = arith.constant dense<0.000000e+00> : vector<8xf32>
    %43 = vector.multi_reduction <add>, %42, %cst_22 [1] : vector<8x512xf32> to vector<8xf32>
    %44 = vector.shape_cast %43 : vector<8xf32> to vector<8x1xf32>
    %cst_23 = arith.constant 5.120000e+02 : f32
    %45 = vector.broadcast %cst_23 : f32 to vector<8x1xf32>
    %46 = arith.divf %44, %45 : vector<8x1xf32>
    %47 = vector.broadcast %41 : vector<8x1xf32> to vector<8x512xf32>
    %48 = arith.subf %37, %47 : vector<8x512xf32>
    %49 = arith.mulf %41, %41 : vector<8x1xf32>
    %50 = arith.subf %46, %49 : vector<8x1xf32>
    %cst_24 = arith.constant 9.99999974E-6 : f32
    %51 = vector.broadcast %cst_24 : f32 to vector<8x1xf32>
    %52 = arith.addf %50, %51 : vector<8x1xf32>
    %53 = math.rsqrt %52 : vector<8x1xf32>
    %54 = vector.broadcast %53 : vector<8x1xf32> to vector<8x512xf32>
    %55 = arith.mulf %48, %54 : vector<8x512xf32>
    %56 = arith.truncf %55 : vector<8x512xf32> to vector<8x512xbf16>
    %c0_25 = arith.constant 0 : index
    %c0_26 = arith.constant 0 : index
    %57 = vector.load %arg4[%c0_25, %c0_26] : memref<512x512xbf16, #tpu.memory_space<vmem>>, vector<512x512xbf16>
    %cst_27 = arith.constant dense<0.000000e+00> : vector<8x512xf32>
    %58 = tpu.matmul %56, %57, %cst_27 {dimension_numbers = #tpu.dot_dimension_numbers<[1], [0], [0], [1], [0, 0, 1, 1], [], []>} : vector<8x512xbf16>, vector<512x512xbf16>, vector<8x512xf32> -> vector<8x512xf32>
    %59 = vector.broadcast %2 : vector<1x512xf32> to vector<8x512xf32>
    %60 = arith.addf %58, %59 : vector<8x512xf32>
    %cst_28 = arith.constant 0.000000e+00 : f32
    %61 = vector.broadcast %cst_28 : f32 to vector<8x512xf32>
    %62 = arith.maximumf %60, %61 : vector<8x512xf32>
    %63 = vector.extract_strided_slice %62 {offsets = [0, 0], sizes = [8, 256], strides = [1, 1]} : vector<8x512xf32> to vector<8x256xf32>
    %cst_29 = arith.constant dense<0.000000e+00> : vector<8xf32>
    %64 = vector.multi_reduction <add>, %63, %cst_29 [1] : vector<8x256xf32> to vector<8xf32>
    %65 = vector.shape_cast %64 : vector<8xf32> to vector<8x1xf32>
    %cst_30 = arith.constant 2.560000e+02 : f32
    %66 = vector.broadcast %cst_30 : f32 to vector<8x1xf32>
    %67 = arith.divf %65, %66 : vector<8x1xf32>
    %68 = arith.mulf %63, %63 : vector<8x256xf32>
    %cst_31 = arith.constant dense<0.000000e+00> : vector<8xf32>
    %69 = vector.multi_reduction <add>, %68, %cst_31 [1] : vector<8x256xf32> to vector<8xf32>
    %70 = vector.shape_cast %69 : vector<8xf32> to vector<8x1xf32>
    %cst_32 = arith.constant 2.560000e+02 : f32
    %71 = vector.broadcast %cst_32 : f32 to vector<8x1xf32>
    %72 = arith.divf %70, %71 : vector<8x1xf32>
    %73 = vector.broadcast %67 : vector<8x1xf32> to vector<8x256xf32>
    %74 = arith.subf %63, %73 : vector<8x256xf32>
    %75 = arith.mulf %67, %67 : vector<8x1xf32>
    %76 = arith.subf %72, %75 : vector<8x1xf32>
    %cst_33 = arith.constant 9.99999974E-6 : f32
    %77 = vector.broadcast %cst_33 : f32 to vector<8x1xf32>
    %78 = arith.addf %76, %77 : vector<8x1xf32>
    %79 = math.rsqrt %78 : vector<8x1xf32>
    %80 = vector.broadcast %79 : vector<8x1xf32> to vector<8x256xf32>
    %81 = arith.mulf %74, %80 : vector<8x256xf32>
    %82 = vector.extract_strided_slice %62 {offsets = [0, 256], sizes = [8, 256], strides = [1, 1]} : vector<8x512xf32> to vector<8x256xf32>
    %cst_34 = arith.constant dense<0.000000e+00> : vector<8xf32>
    %83 = vector.multi_reduction <add>, %82, %cst_34 [1] : vector<8x256xf32> to vector<8xf32>
    %84 = vector.shape_cast %83 : vector<8xf32> to vector<8x1xf32>
    %cst_35 = arith.constant 2.560000e+02 : f32
    %85 = vector.broadcast %cst_35 : f32 to vector<8x1xf32>
    %86 = arith.divf %84, %85 : vector<8x1xf32>
    %87 = arith.mulf %82, %82 : vector<8x256xf32>
    %cst_36 = arith.constant dense<0.000000e+00> : vector<8xf32>
    %88 = vector.multi_reduction <add>, %87, %cst_36 [1] : vector<8x256xf32> to vector<8xf32>
    %89 = vector.shape_cast %88 : vector<8xf32> to vector<8x1xf32>
    %cst_37 = arith.constant 2.560000e+02 : f32
    %90 = vector.broadcast %cst_37 : f32 to vector<8x1xf32>
    %91 = arith.divf %89, %90 : vector<8x1xf32>
    %92 = vector.broadcast %86 : vector<8x1xf32> to vector<8x256xf32>
    %93 = arith.subf %82, %92 : vector<8x256xf32>
    %94 = arith.mulf %86, %86 : vector<8x1xf32>
    %95 = arith.subf %91, %94 : vector<8x1xf32>
    %cst_38 = arith.constant 9.99999974E-6 : f32
    %96 = vector.broadcast %cst_38 : f32 to vector<8x1xf32>
    %97 = arith.addf %95, %96 : vector<8x1xf32>
    %98 = math.rsqrt %97 : vector<8x1xf32>
    %99 = vector.broadcast %98 : vector<8x1xf32> to vector<8x256xf32>
    %100 = arith.mulf %93, %99 : vector<8x256xf32>
    %101 = vector.broadcast %3 : vector<1x256xf32> to vector<8x256xf32>
    %102 = arith.mulf %81, %101 : vector<8x256xf32>
    %cst_39 = arith.constant dense<0.000000e+00> : vector<8xf32>
    %103 = vector.multi_reduction <add>, %102, %cst_39 [1] : vector<8x256xf32> to vector<8xf32>
    %104 = vector.shape_cast %103 : vector<8xf32> to vector<8x1xf32>
    %105 = vector.broadcast %4 : vector<1x1xf32> to vector<8x1xf32>
    %106 = arith.addf %104, %105 : vector<8x1xf32>
    %107 = arith.truncf %100 : vector<8x256xf32> to vector<8x256xbf16>
    %c0_40 = arith.constant 0 : index
    %c0_41 = arith.constant 0 : index
    %108 = vector.load %arg5[%c0_40, %c0_41] : memref<256x128xbf16, #tpu.memory_space<vmem>>, vector<256x128xbf16>
    %cst_42 = arith.constant dense<0.000000e+00> : vector<8x128xf32>
    %109 = tpu.matmul %107, %108, %cst_42 {dimension_numbers = #tpu.dot_dimension_numbers<[1], [0], [0], [1], [0, 0, 1, 1], [], []>} : vector<8x256xbf16>, vector<256x128xbf16>, vector<8x128xf32> -> vector<8x128xf32>
    %110 = vector.broadcast %5 : vector<1x128xf32> to vector<8x128xf32>
    %111 = arith.addf %109, %110 : vector<8x128xf32>
    %112 = vector.broadcast %106 : vector<8x1xf32> to vector<8x128xf32>
    %113 = arith.addf %112, %111 : vector<8x128xf32>
    %c0_43 = arith.constant 0 : index
    %c0_44 = arith.constant 0 : index
    %114 = vector.load %arg7[%c0_43, %c0_44] : memref<8x128xf32, #tpu.memory_space<vmem>>, vector<8x128xf32>
    tpu.vector_store %arg7[%c0_43, %c0_44], %113 {strides = array<i32>} : memref<8x128xf32, #tpu.memory_space<vmem>>, vector<8x128xf32>,
    return
  }
  func.func @transform_0(%arg0: i32) -> (i32, i32) {
    %c0_i32 = arith.constant 0 : i32
    %c0_i32_0 = arith.constant 0 : i32
    return %arg0, %c0_i32 : i32, i32
  }
  func.func @transform_1(%arg0: i32) -> (i32, i32) {
    %c0_i32 = arith.constant 0 : i32
    %c0_i32_0 = arith.constant 0 : i32
    %c0_i32_1 = arith.constant 0 : i32
    return %c0_i32, %c0_i32_0 : i32, i32
  }
  func.func @transform_2(%arg0: i32) -> (i32, i32) {
    %c0_i32 = arith.constant 0 : i32
    %c0_i32_0 = arith.constant 0 : i32
    %c0_i32_1 = arith.constant 0 : i32
    return %c0_i32, %c0_i32_0 : i32, i32
  }
  func.func @transform_3(%arg0: i32) -> (i32, i32) {
    %c0_i32 = arith.constant 0 : i32
    %c0_i32_0 = arith.constant 0 : i32
    %c0_i32_1 = arith.constant 0 : i32
    return %c0_i32, %c0_i32_0 : i32, i32
  }
  func.func @transform_4(%arg0: i32) -> (i32, i32) {
    %c0_i32 = arith.constant 0 : i32
    %c0_i32_0 = arith.constant 0 : i32
    %c0_i32_1 = arith.constant 0 : i32
    return %c0_i32, %c0_i32_0 : i32, i32
  }
  func.func @transform_5(%arg0: i32) -> (i32, i32) {
    %c0_i32 = arith.constant 0 : i32
    %c0_i32_0 = arith.constant 0 : i32
    %c0_i32_1 = arith.constant 0 : i32
    return %c0_i32, %c0_i32_0 : i32, i32
  }
  func.func @transform_6(%arg0: i32) -> (i32, i32) {
    %c0_i32 = arith.constant 0 : i32
    %c0_i32_0 = arith.constant 0 : i32
    return %arg0, %c0_i32 : i32, i32
  }
}

</mosaic_0001>

<llo_original>
// kernel: tpu_custom_call.1
$region0: #{tpu_custom_call.1}
  #allocation0 [shape = 'u32[]', space=smem, size = 0x4, offset = 0x4, fixed_abs, tag = 'smem constant byte address 0x4 - core index']
  #allocation1 [shape = 'u32[144,128]{1,0:T(1,128)}', space=vmem, size = 0x12000, scoped, tag = 'internal scratch']
  %s0 = inlined_call_operand.hbm [shape: bf16[8,128], index: 0, kind: input, shape index: {}]
  %s1 = inlined_call_operand.hbm [shape: bf16[128,256], index: 1, kind: input, shape index: {}]
  %s2 = inlined_call_operand.hbm [shape: bf16[256,512], index: 2, kind: input, shape index: {}]
  %s3 = inlined_call_operand.hbm [shape: bf16[512,512], index: 3, kind: input, shape index: {}]
  %s4 = inlined_call_operand.hbm [shape: bf16[256,128], index: 4, kind: input, shape index: {}]
  %s5 = inlined_call_operand.hbm [shape: f32[8,512], index: 5, kind: input, shape index: {}]
  %s6 = inlined_call_operand.hbm [shape: f32[8,128], index: 6, kind: output, shape index: {}]
  %s7 = sld [smem:[#allocation0]]
  $region58: #{tpu_custom_call.1} parent=0
    _
  %s9 = ssub.s32 1, %s7
  %s10 = scalar_select 0, %s9, %s7
  $region1: #{tpu_custom_call.1} parent=0
    #allocation2 [shape = 'u8[2048]{0}', space=vmem, size = 0x800, scoped, tag = 'input window, operand 0, single buffered']
    #allocation3 [shape = 's32[1]{0}', space=sflag, size = 0x4, scoped, tag = 'scoped memory for tpu_custom_call.1']
    #allocation4 [shape = 's32[1]{0}', space=sflag, size = 0x4, scoped, tag = 'scoped memory for tpu_custom_call.1']
    #allocation5 [shape = 'u8[65536]{0}', space=vmem, size = 0x10000, scoped, tag = 'input window, operand 1, single buffered']
    #allocation6 [shape = 's32[1]{0}', space=sflag, size = 0x4, scoped, tag = 'scoped memory for tpu_custom_call.1']
    #allocation7 [shape = 'u8[262144]{0}', space=vmem, size = 0x40000, scoped, tag = 'input window, operand 2, single buffered']
    #allocation8 [shape = 'u8[524288]{0}', space=vmem, size = 0x80000, scoped, tag = 'input window, operand 3, single buffered']
    #allocation9 [shape = 's32[1]{0}', space=sflag, size = 0x4, scoped, tag = 'scoped memory for tpu_custom_call.1']
    #allocation10 [shape = 'u8[65536]{0}', space=vmem, size = 0x10000, scoped, tag = 'input window, operand 4, single buffered']
    #allocation11 [shape = 'u8[16384]{0}', space=vmem, size = 0x4000, scoped, tag = 'input window, operand 5, single buffered']
    #allocation12 [shape = 's32[1]{0}', space=sflag, size = 0x4, scoped, tag = 'scoped memory for tpu_custom_call.1']
    #allocation13 [shape = 'u8[4096]{0}', space=vmem, size = 0x1000, scoped, tag = 'output window, operand 0, single buffered']
    %11 = vsyncpa [#allocation3], 0
    %12 = vsyncpa [#allocation6], 0
    %13 = vsyncpa [#allocation9], 0
    %14 = vsyncpa [#allocation12], 0
    %15 = vsyncpa [#allocation4], 0
    // Predicated region
    $region2: #{tpu_custom_call.1} parent=1 // pred_check
      _
    $region3: #{tpu_custom_call.1} parent=1 // pred_check_branch
      %17 = sbr.rel (0) target = $region5
    $region4: #{tpu_custom_call.1} parent=1 // pred_region
      %s19 = ssub.s32 64, 64
      %20 = vsyncadd [#allocation3], %s19
      %s22 = sshll.u32 [#allocation2], 4
      %s23 = int_to_ptr.vmem [resolvable:$true] %s22
      %25 = dma.hbm_to_vmem [thread:$0]  %s0, 64, %s23, [#allocation3]
    $region5: #{tpu_custom_call.1} parent=1 // pred_fallthru
      _
    // Predicated region
    $region6: #{tpu_custom_call.1} parent=1 // pred_check
      _
    $region7: #{tpu_custom_call.1} parent=1 // pred_check_branch
      %27 = sbr.rel (0) target = $region9
    $region8: #{tpu_custom_call.1} parent=1 // pred_region
      %s29 = ssub.s32 2048, 2048
      %30 = vsyncadd [#allocation6], %s29
      %s31 = sshll.u32 [#allocation5], 4
      %s32 = int_to_ptr.vmem [resolvable:$true] %s31
      %37 = dma.hbm_to_vmem [thread:$0]  %s1, 2048, %s32, [#allocation6], 128, 128, 8
    $region9: #{tpu_custom_call.1} parent=1 // pred_fallthru
      _
    // Predicated region
    $region10: #{tpu_custom_call.1} parent=1 // pred_check
      _
    $region11: #{tpu_custom_call.1} parent=1 // pred_check_branch
      %39 = sbr.rel (0) target = $region13
    $region12: #{tpu_custom_call.1} parent=1 // pred_region
      %s41 = ssub.s32 8192, 8192
      %42 = vsyncadd [#allocation6], %s41
      %s43 = sshll.u32 [#allocation7], 4
      %s44 = int_to_ptr.vmem [resolvable:$true] %s43
      %49 = dma.hbm_to_vmem [thread:$0]  %s2, 8192, %s44, [#allocation6], 256, 256, 16
    $region13: #{tpu_custom_call.1} parent=1 // pred_fallthru
      _
    // Predicated region
    $region14: #{tpu_custom_call.1} parent=1 // pred_check
      _
    $region15: #{tpu_custom_call.1} parent=1 // pred_check_branch
      %51 = sbr.rel (0) target = $region17
    $region16: #{tpu_custom_call.1} parent=1 // pred_region
      %s53 = ssub.s32 16384, 16384
      %54 = vsyncadd [#allocation9], %s53
      %s55 = sshll.u32 [#allocation8], 4
      %s56 = int_to_ptr.vmem [resolvable:$true] %s55
      %61 = dma.hbm_to_vmem [thread:$0]  %s3, 16384, %s56, [#allocation9], 256, 256, 16
    $region17: #{tpu_custom_call.1} parent=1 // pred_fallthru
      _
    // Predicated region
    $region18: #{tpu_custom_call.1} parent=1 // pred_check
      _
    $region19: #{tpu_custom_call.1} parent=1 // pred_check_branch
      %63 = sbr.rel (0) target = $region21
    $region20: #{tpu_custom_call.1} parent=1 // pred_region
      %s65 = ssub.s32 2048, 2048
      %66 = vsyncadd [#allocation9], %s65
      %s67 = sshll.u32 [#allocation10], 4
      %s68 = int_to_ptr.vmem [resolvable:$true] %s67
      %73 = dma.hbm_to_vmem [thread:$0]  %s4, 2048, %s68, [#allocation9], 64, 64, 4
    $region21: #{tpu_custom_call.1} parent=1 // pred_fallthru
      _
    // Predicated region
    $region22: #{tpu_custom_call.1} parent=1 // pred_check
      _
    $region23: #{tpu_custom_call.1} parent=1 // pred_check_branch
      %75 = sbr.rel (0) target = $region25
    $region24: #{tpu_custom_call.1} parent=1 // pred_region
      %s77 = ssub.s32 512, 512
      %78 = vsyncadd [#allocation12], %s77
      %s80 = sshll.u32 [#allocation11], 4
      %s81 = int_to_ptr.vmem [resolvable:$true] %s80
      %83 = dma.hbm_to_vmem [thread:$0]  %s5, 512, %s81, [#allocation12]
    $region25: #{tpu_custom_call.1} parent=1 // pred_fallthru
      _
    // Predicated region
    $region26: #{tpu_custom_call.1} parent=1 // pred_check
      _
    $region27: #{tpu_custom_call.1} parent=1 // pred_check_branch
      %85 = sbr.rel (0) target = $region29
    $region28: #{tpu_custom_call.1} parent=1 // pred_region
      %86 = dma.done [#allocation3], 64
    $region29: #{tpu_custom_call.1} parent=1 // pred_fallthru
      _
    // Predicated region
    $region30: #{tpu_custom_call.1} parent=1 // pred_check
      _
    $region31: #{tpu_custom_call.1} parent=1 // pred_check_branch
      %88 = sbr.rel (0) target = $region33
    $region32: #{tpu_custom_call.1} parent=1 // pred_region
      %89 = dma.done [#allocation6], 2048
    $region33: #{tpu_custom_call.1} parent=1 // pred_fallthru
      _
    // Predicated region
    $region34: #{tpu_custom_call.1} parent=1 // pred_check
      _
    $region35: #{tpu_custom_call.1} parent=1 // pred_check_branch
      %91 = sbr.rel (0) target = $region37
    $region36: #{tpu_custom_call.1} parent=1 // pred_region
      %92 = dma.done [#allocation6], 8192
    $region37: #{tpu_custom_call.1} parent=1 // pred_fallthru
      _
    // Predicated region
    $region38: #{tpu_custom_call.1} parent=1 // pred_check
      _
    $region39: #{tpu_custom_call.1} parent=1 // pred_check_branch
      %94 = sbr.rel (0) target = $region41
    $region40: #{tpu_custom_call.1} parent=1 // pred_region
      %95 = dma.done [#allocation9], 16384
    $region41: #{tpu_custom_call.1} parent=1 // pred_fallthru
      _
    // Predicated region
    $region42: #{tpu_custom_call.1} parent=1 // pred_check
      _
    $region43: #{tpu_custom_call.1} parent=1 // pred_check_branch
      %97 = sbr.rel (0) target = $region45
    $region44: #{tpu_custom_call.1} parent=1 // pred_region
      %98 = dma.done [#allocation9], 2048
    $region45: #{tpu_custom_call.1} parent=1 // pred_fallthru
      _
    // Predicated region
    $region46: #{tpu_custom_call.1} parent=1 // pred_check
      _
    $region47: #{tpu_custom_call.1} parent=1 // pred_check_branch
      %100 = sbr.rel (0) target = $region49
    $region48: #{tpu_custom_call.1} parent=1 // pred_region
      %101 = dma.done [#allocation12], 512
    $region49: #{tpu_custom_call.1} parent=1 // pred_fallthru
      _
    %v103 = vld [vmem:[#allocation11] ss:$8 sm:$0x3]
    %s104 = scalar_lea.vmem [#allocation11], 1
    %v105 = vld [vmem:[%s104] ss:$8 sm:$0xf]
    %s106 = scalar_lea.vmem [#allocation11], 2
    %v107 = vld [vmem:[%s106] ss:$8 sm:$0xf]
    %s108 = scalar_lea.vmem [#allocation11], 3
    %v109 = vld [vmem:[%s108] ss:$8 sm:$0x3]
    %v110 = vld [vmem:[#allocation11 + $0x4] ss:$0 sm:$0xff]
    %v111 = vld [vmem:[#allocation11 + $0x5] ss:$0 sm:$0xff]
    %v112 = vld [vmem:[#allocation2] sm:$0xf]
    %v113 = vld [vmem:[#allocation5] sm:$0xff]
    %v114 = vld [vmem:[#allocation5 + $0x8] sm:$0xff]
    %v115 = vld [vmem:[#allocation5 + $0x10] sm:$0xff]
    %v116 = vld [vmem:[#allocation5 + $0x18] sm:$0xff]
    %v117 = vld [vmem:[#allocation5 + $0x20] sm:$0xff]
    %v118 = vld [vmem:[#allocation5 + $0x28] sm:$0xff]
    %v119 = vld [vmem:[#allocation5 + $0x30] sm:$0xff]
    %v120 = vld [vmem:[#allocation5 + $0x38] sm:$0xff]
    %v121 = vld [vmem:[#allocation5 + $0x40] sm:$0xff]
    %v122 = vld [vmem:[#allocation5 + $0x48] sm:$0xff]
    %v123 = vld [vmem:[#allocation5 + $0x50] sm:$0xff]
    %v124 = vld [vmem:[#allocation5 + $0x58] sm:$0xff]
    %v125 = vld [vmem:[#allocation5 + $0x60] sm:$0xff]
    %v126 = vld [vmem:[#allocation5 + $0x68] sm:$0xff]
    %v127 = vld [vmem:[#allocation5 + $0x70] sm:$0xff]
    %v128 = vld [vmem:[#allocation5 + $0x78] sm:$0xff]
    %v130 = vlaneseq
    %v131 = vshrl.u32 %v130, 7
    %v132 = vsub.s32 0, %v131
    %v133 = vrot.slane %v103, %v132
    %v134 = vlaneseq
    %v135 = vshrl.u32 %v134, 7
    %v136 = vsub.s32 1, %v135
    %v137 = vrot.slane %v103, %v136
    %v156 = vunpack.c.l.b16 %v113
    %v157 = vunpack.c.h.b16 %v113
    %v158 = vunpack.c.l.b16 %v114
    %v159 = vunpack.c.h.b16 %v114
    %v160 = vunpack.c.l.b16 %v115
    %v161 = vunpack.c.h.b16 %v115
    %v162 = vunpack.c.l.b16 %v116
    %v163 = vunpack.c.h.b16 %v116
    %v164 = vunpack.c.l.b16 %v117
    %v165 = vunpack.c.h.b16 %v117
    %v166 = vunpack.c.l.b16 %v118
    %v167 = vunpack.c.h.b16 %v118
    %v168 = vunpack.c.l.b16 %v119
    %v169 = vunpack.c.h.b16 %v119
    %v170 = vunpack.c.l.b16 %v120
    %v171 = vunpack.c.h.b16 %v120
    %v172 = vunpack.c.l.b16 %v121
    %v173 = vunpack.c.h.b16 %v121
    %v174 = vunpack.c.l.b16 %v122
    %v175 = vunpack.c.h.b16 %v122
    %v176 = vunpack.c.l.b16 %v123
    %v177 = vunpack.c.h.b16 %v123
    %v178 = vunpack.c.l.b16 %v124
    %v179 = vunpack.c.h.b16 %v124
    %v180 = vunpack.c.l.b16 %v125
    %v181 = vunpack.c.h.b16 %v125
    %v182 = vunpack.c.l.b16 %v126
    %v183 = vunpack.c.h.b16 %v126
    %v184 = vunpack.c.l.b16 %v127
    %v185 = vunpack.c.h.b16 %v127
    %v186 = vunpack.c.l.b16 %v128
    %v187 = vunpack.c.h.b16 %v128
    %v188 = vpack.c.b16 %v158, %v156
    %v189 = vpack.c.b16 %v159, %v157
    %v190 = vpack.c.b16 %v162, %v160
    %v191 = vpack.c.b16 %v163, %v161
    %v192 = vpack.c.b16 %v166, %v164
    %v193 = vpack.c.b16 %v167, %v165
    %v194 = vpack.c.b16 %v170, %v168
    %v195 = vpack.c.b16 %v171, %v169
    %v196 = vpack.c.b16 %v174, %v172
    %v197 = vpack.c.b16 %v175, %v173
    %v198 = vpack.c.b16 %v178, %v176
    %v199 = vpack.c.b16 %v179, %v177
    %v200 = vpack.c.b16 %v182, %v180
    %v201 = vpack.c.b16 %v183, %v181
    %v202 = vpack.c.b16 %v186, %v184
    %v203 = vpack.c.b16 %v187, %v185
    %220 = vmatprep.subr.bf16.mxu0 %v189
    %221 = vmatpush1.bf16.msra.mxu0 %v188
    %222 = vmatprep.subr.bf16.mxu0 %v191
    %223 = vmatpush1.bf16.msra.mxu0 %v190
    %224 = vmatprep.subr.bf16.mxu0 %v193
    %225 = vmatpush1.bf16.msra.mxu0 %v192
    %226 = vmatprep.subr.bf16.mxu0 %v195
    %227 = vmatpush1.bf16.msra.mxu0 %v194
    %228 = vmatprep.subr.bf16.mxu0 %v197
    %229 = vmatpush1.bf16.msra.mxu0 %v196
    %230 = vmatprep.subr.bf16.mxu0 %v199
    %231 = vmatpush1.bf16.msra.mxu0 %v198
    %232 = vmatprep.subr.bf16.mxu0 %v201
    %233 = vmatpush1.bf16.msra.mxu0 %v200
    %234 = vmatprep.subr.bf16.mxu0 %v203
    %235 = vmatpush1.bf16.msra.mxu0 %v202
    %236 = vmatprep.subr.bf16.mxu0 0
    %237 = vmatpush1.bf16.msra.mxu0 0
    %238 = vmatprep.subr.bf16.mxu0 0
    %239 = vmatpush1.bf16.msra.mxu0 0
    %240 = vmatprep.subr.bf16.mxu0 0
    %241 = vmatpush1.bf16.msra.mxu0 0
    %242 = vmatprep.subr.bf16.mxu0 0
    %243 = vmatpush1.bf16.msra.mxu0 0
    %244 = vmatprep.subr.bf16.mxu0 0
    %245 = vmatpush1.bf16.msra.mxu0 0
    %246 = vmatprep.subr.bf16.mxu0 0
    %247 = vmatpush1.bf16.msra.mxu0 0
    %248 = vmatprep.subr.bf16.mxu0 0
    %249 = vmatpush1.bf16.msra.mxu0 0
    %250 = vmatprep.subr.bf16.mxu0 0
    %251 = vmatpush1.bf16.msra.mxu0 0
    %252 = vmatprep.mubr.bf16.mxu0 0
    %253 = vmatmul.mubr.bf16.gmra.mrb[0].mxu0 %v112
    %v254 = vpop.f32.mrb[0].mxu0
    %v255 = vadd.f32 %v133, %v254
    %v256 = vpop.f32.mrb[0].mxu0
    %v257 = vadd.f32 %v137, %v256
    %v258 = vpop.f32.mrb[0].mxu0
    %v259 = vpop.f32.mrb[0].mxu0
    %260 = vdwg.mxu0
    %v261 = vmax.f32 %v255, 0.0
    %v262 = vmax.f32 %v257, 0.0
    %v263 = vadd.f32 %v261, %v262
    %264 = vadd.xlane.f32.xlu0 %v263
    %v265 = vpop.xlane.xlu0 %264
    %v266 = vrcp.pop 256.0
    %v267 = vmul.f32 %v265, %v266
    %v268 = vmul.f32 %v261, %v261
    %v269 = vmul.f32 %v262, %v262
    %v270 = vadd.f32 %v268, %v269
    %271 = vadd.xlane.f32.xlu0 %v270
    %v272 = vpop.xlane.xlu0 %271
    %v273 = vmul.f32 %v272, %v266
    %v274 = vsub.f32 %v261, %v267
    %v275 = vsub.f32 %v262, %v267
    %v276 = vmul.f32 %v267, %v267
    %v277 = vsub.f32 %v273, %v276
    %v278 = vadd.f32 %v277, 1e-05
    %v279 = vrsqrt.pop %v278
    %v280 = vmul.f32 %v274, %v279
    %v281 = vmul.f32 %v275, %v279
    %v282 = vpack.c.bf16 %v280, %v280
    %v283 = vpack.c.bf16 %v281, %v281
    %v284 = vld [vmem:[#allocation7] sm:$0xff]
    %v285 = vld [vmem:[#allocation7 + $0x8] sm:$0xff]
    %v286 = vld [vmem:[#allocation7 + $0x10] sm:$0xff]
    %v287 = vld [vmem:[#allocation7 + $0x18] sm:$0xff]
    %v288 = vld [vmem:[#allocation7 + $0x20] sm:$0xff]
    %v289 = vld [vmem:[#allocation7 + $0x28] sm:$0xff]
    %v290 = vld [vmem:[#allocation7 + $0x30] sm:$0xff]
    %v291 = vld [vmem:[#allocation7 + $0x38] sm:$0xff]
    %v292 = vld [vmem:[#allocation7 + $0x40] sm:$0xff]
    %v293 = vld [vmem:[#allocation7 + $0x48] sm:$0xff]
    %v294 = vld [vmem:[#allocation7 + $0x50] sm:$0xff]
    %v295 = vld [vmem:[#allocation7 + $0x58] sm:$0xff]
    %v296 = vld [vmem:[#allocation7 + $0x60] sm:$0xff]
    %v297 = vld [vmem:[#allocation7 + $0x68] sm:$0xff]
    %v298 = vld [vmem:[#allocation7 + $0x70] sm:$0xff]
    %v299 = vld [vmem:[#allocation7 + $0x78] sm:$0xff]
    %v300 = vld [vmem:[#allocation7 + $0x80] sm:$0xff]
    %v301 = vld [vmem:[#allocation7 + $0x88] sm:$0xff]
    %v302 = vld [vmem:[#allocation7 + $0x90] sm:$0xff]
    %v303 = vld [vmem:[#allocation7 + $0x98] sm:$0xff]
    %v304 = vld [vmem:[#allocation7 + $0xa0] sm:$0xff]
    %v305 = vld [vmem:[#allocation7 + $0xa8] sm:$0xff]
    %v306 = vld [vmem:[#allocation7 + $0xb0] sm:$0xff]
    %v307 = vld [vmem:[#allocation7 + $0xb8] sm:$0xff]
    %v308 = vld [vmem:[#allocation7 + $0xc0] sm:$0xff]
    %v309 = vld [vmem:[#allocation7 + $0xc8] sm:$0xff]
    %v310 = vld [vmem:[#allocation7 + $0xd0] sm:$0xff]
    %v311 = vld [vmem:[#allocation7 + $0xd8] sm:$0xff]
    %v312 = vld [vmem:[#allocation7 + $0xe0] sm:$0xff]
    %v313 = vld [vmem:[#allocation7 + $0xe8] sm:$0xff]
    %v314 = vld [vmem:[#allocation7 + $0xf0] sm:$0xff]
    %v315 = vld [vmem:[#allocation7 + $0xf8] sm:$0xff]
    %v316 = vld [vmem:[#allocation7 + $0x100] sm:$0xff]
    %v317 = vld [vmem:[#allocation7 + $0x108] sm:$0xff]
    %v318 = vld [vmem:[#allocation7 + $0x110] sm:$0xff]
    %v319 = vld [vmem:[#allocation7 + $0x118] sm:$0xff]
    %v320 = vld [vmem:[#allocation7 + $0x120] sm:$0xff]
    %v321 = vld [vmem:[#allocation7 + $0x128] sm:$0xff]
    %v322 = vld [vmem:[#allocation7 + $0x130] sm:$0xff]
    %v323 = vld [vmem:[#allocation7 + $0x138] sm:$0xff]
    %v324 = vld [vmem:[#allocation7 + $0x140] sm:$0xff]
    %v325 = vld [vmem:[#allocation7 + $0x148] sm:$0xff]
    %v326 = vld [vmem:[#allocation7 + $0x150] sm:$0xff]
    %v327 = vld [vmem:[#allocation7 + $0x158] sm:$0xff]
    %v328 = vld [vmem:[#allocation7 + $0x160] sm:$0xff]
    %v329 = vld [vmem:[#allocation7 + $0x168] sm:$0xff]
    %v330 = vld [vmem:[#allocation7 + $0x170] sm:$0xff]
    %v331 = vld [vmem:[#allocation7 + $0x178] sm:$0xff]
    %v332 = vld [vmem:[#allocation7 + $0x180] sm:$0xff]
    %v333 = vld [vmem:[#allocation7 + $0x188] sm:$0xff]
    %v334 = vld [vmem:[#allocation7 + $0x190] sm:$0xff]
    %v335 = vld [vmem:[#allocation7 + $0x198] sm:$0xff]
    %v336 = vld [vmem:[#allocation7 + $0x1a0] sm:$0xff]
    %v337 = vld [vmem:[#allocation7 + $0x1a8] sm:$0xff]
    %v338 = vld [vmem:[#allocation7 + $0x1b0] sm:$0xff]
    %v339 = vld [vmem:[#allocation7 + $0x1b8] sm:$0xff]
    %v340 = vld [vmem:[#allocation7 + $0x1c0] sm:$0xff]
    %v341 = vld [vmem:[#allocation7 + $0x1c8] sm:$0xff]
    %v342 = vld [vmem:[#allocation7 + $0x1d0] sm:$0xff]
    %v343 = vld [vmem:[#allocation7 + $0x1d8] sm:$0xff]
    %v344 = vld [vmem:[#allocation7 + $0x1e0] sm:$0xff]
    %v345 = vld [vmem:[#allocation7 + $0x1e8] sm:$0xff]
    %v346 = vld [vmem:[#allocation7 + $0x1f0] sm:$0xff]
    %v347 = vld [vmem:[#allocation7 + $0x1f8] sm:$0xff]
    %v349 = vlaneseq
    %v350 = vshrl.u32 %v349, 7
    %v351 = vsub.s32 0, %v350
    %v352 = vrot.slane %v105, %v351
    %v353 = vlaneseq
    %v354 = vshrl.u32 %v353, 7
    %v355 = vsub.s32 1, %v354
    %v356 = vrot.slane %v105, %v355
    %v357 = vlaneseq
    %v358 = vshrl.u32 %v357, 7
    %v359 = vsub.s32 2, %v358
    %v360 = vrot.slane %v105, %v359
    %v361 = vlaneseq
    %v362 = vshrl.u32 %v361, 7
    %v363 = vsub.s32 3, %v362
    %v364 = vrot.slane %v105, %v363
    %v433 = vunpack.c.l.b16 %v284
    %v434 = vunpack.c.h.b16 %v284
    %v435 = vunpack.c.l.b16 %v285
    %v436 = vunpack.c.h.b16 %v285
    %v437 = vunpack.c.l.b16 %v286
    %v438 = vunpack.c.h.b16 %v286
    %v439 = vunpack.c.l.b16 %v287
    %v440 = vunpack.c.h.b16 %v287
    %v441 = vunpack.c.l.b16 %v288
    %v442 = vunpack.c.h.b16 %v288
    %v443 = vunpack.c.l.b16 %v289
    %v444 = vunpack.c.h.b16 %v289
    %v445 = vunpack.c.l.b16 %v290
    %v446 = vunpack.c.h.b16 %v290
    %v447 = vunpack.c.l.b16 %v291
    %v448 = vunpack.c.h.b16 %v291
    %v449 = vunpack.c.l.b16 %v292
    %v450 = vunpack.c.h.b16 %v292
    %v451 = vunpack.c.l.b16 %v293
    %v452 = vunpack.c.h.b16 %v293
    %v453 = vunpack.c.l.b16 %v294
    %v454 = vunpack.c.h.b16 %v294
    %v455 = vunpack.c.l.b16 %v295
    %v456 = vunpack.c.h.b16 %v295
    %v457 = vunpack.c.l.b16 %v296
    %v458 = vunpack.c.h.b16 %v296
    %v459 = vunpack.c.l.b16 %v297
    %v460 = vunpack.c.h.b16 %v297
    %v461 = vunpack.c.l.b16 %v298
    %v462 = vunpack.c.h.b16 %v298
    %v463 = vunpack.c.l.b16 %v299
    %v464 = vunpack.c.h.b16 %v299
    %v465 = vunpack.c.l.b16 %v300
    %v466 = vunpack.c.h.b16 %v300
    %v467 = vunpack.c.l.b16 %v301
    %v468 = vunpack.c.h.b16 %v301
    %v469 = vunpack.c.l.b16 %v302
    %v470 = vunpack.c.h.b16 %v302
    %v471 = vunpack.c.l.b16 %v303
    %v472 = vunpack.c.h.b16 %v303
    %v473 = vunpack.c.l.b16 %v304
    %v474 = vunpack.c.h.b16 %v304
    %v475 = vunpack.c.l.b16 %v305
    %v476 = vunpack.c.h.b16 %v305
    %v477 = vunpack.c.l.b16 %v306
    %v478 = vunpack.c.h.b16 %v306
    %v479 = vunpack.c.l.b16 %v307
    %v480 = vunpack.c.h.b16 %v307
    %v481 = vunpack.c.l.b16 %v308
    %v482 = vunpack.c.h.b16 %v308
    %v483 = vunpack.c.l.b16 %v309
    %v484 = vunpack.c.h.b16 %v309
    %v485 = vunpack.c.l.b16 %v310
    %v486 = vunpack.c.h.b16 %v310
    %v487 = vunpack.c.l.b16 %v311
    %v488 = vunpack.c.h.b16 %v311
    %v489 = vunpack.c.l.b16 %v312
    %v490 = vunpack.c.h.b16 %v312
    %v491 = vunpack.c.l.b16 %v313
    %v492 = vunpack.c.h.b16 %v313
    %v493 = vunpack.c.l.b16 %v314
    %v494 = vunpack.c.h.b16 %v314
    %v495 = vunpack.c.l.b16 %v315
    %v496 = vunpack.c.h.b16 %v315
    %v497 = vunpack.c.l.b16 %v316
    %v498 = vunpack.c.h.b16 %v316
    %v499 = vunpack.c.l.b16 %v317
    %v500 = vunpack.c.h.b16 %v317
    %v501 = vunpack.c.l.b16 %v318
    %v502 = vunpack.c.h.b16 %v318
    %v503 = vunpack.c.l.b16 %v319
    %v504 = vunpack.c.h.b16 %v319
    %v505 = vunpack.c.l.b16 %v320
    %v506 = vunpack.c.h.b16 %v320
    %v507 = vunpack.c.l.b16 %v321
    %v508 = vunpack.c.h.b16 %v321
    %v509 = vunpack.c.l.b16 %v322
    %v510 = vunpack.c.h.b16 %v322
    %v511 = vunpack.c.l.b16 %v323
    %v512 = vunpack.c.h.b16 %v323
    %v513 = vunpack.c.l.b16 %v324
    %v514 = vunpack.c.h.b16 %v324
    %v515 = vunpack.c.l.b16 %v325
    %v516 = vunpack.c.h.b16 %v325
    %v517 = vunpack.c.l.b16 %v326
    %v518 = vunpack.c.h.b16 %v326
    %v519 = vunpack.c.l.b16 %v327
    %v520 = vunpack.c.h.b16 %v327
    %v521 = vunpack.c.l.b16 %v328
    %v522 = vunpack.c.h.b16 %v328
    %v523 = vunpack.c.l.b16 %v329
    %v524 = vunpack.c.h.b16 %v329
    %v525 = vunpack.c.l.b16 %v330
    %v526 = vunpack.c.h.b16 %v330
    %v527 = vunpack.c.l.b16 %v331
    %v528 = vunpack.c.h.b16 %v331
    %v529 = vunpack.c.l.b16 %v332
    %v530 = vunpack.c.h.b16 %v332
    %v531 = vunpack.c.l.b16 %v333
    %v532 = vunpack.c.h.b16 %v333
    %v533 = vunpack.c.l.b16 %v334
    %v534 = vunpack.c.h.b16 %v334
    %v535 = vunpack.c.l.b16 %v335
    %v536 = vunpack.c.h.b16 %v335
    %v537 = vunpack.c.l.b16 %v336
    %v538 = vunpack.c.h.b16 %v336
    %v539 = vunpack.c.l.b16 %v337
    %v540 = vunpack.c.h.b16 %v337
    %v541 = vunpack.c.l.b16 %v338
    %v542 = vunpack.c.h.b16 %v338
    %v543 = vunpack.c.l.b16 %v339
    %v544 = vunpack.c.h.b16 %v339
    %v545 = vunpack.c.l.b16 %v340
    %v546 = vunpack.c.h.b16 %v340
    %v547 = vunpack.c.l.b16 %v341
    %v548 = vunpack.c.h.b16 %v341
    %v549 = vunpack.c.l.b16 %v342
    %v550 = vunpack.c.h.b16 %v342
    %v551 = vunpack.c.l.b16 %v343
    %v552 = vunpack.c.h.b16 %v343
    %v553 = vunpack.c.l.b16 %v344
    %v554 = vunpack.c.h.b16 %v344
    %v555 = vunpack.c.l.b16 %v345
    %v556 = vunpack.c.h.b16 %v345
    %v557 = vunpack.c.l.b16 %v346
    %v558 = vunpack.c.h.b16 %v346
    %v559 = vunpack.c.l.b16 %v347
    %v560 = vunpack.c.h.b16 %v347
    %v561 = vpack.c.b16 %v437, %v433
    %v562 = vpack.c.b16 %v438, %v434
    %v563 = vpack.c.b16 %v439, %v435
    %v564 = vpack.c.b16 %v440, %v436
    %v565 = vpack.c.b16 %v445, %v441
    %v566 = vpack.c.b16 %v446, %v442
    %v567 = vpack.c.b16 %v447, %v443
    %v568 = vpack.c.b16 %v448, %v444
    %v569 = vpack.c.b16 %v453, %v449
    %v570 = vpack.c.b16 %v454, %v450
    %v571 = vpack.c.b16 %v455, %v451
    %v572 = vpack.c.b16 %v456, %v452
    %v573 = vpack.c.b16 %v461, %v457
    %v574 = vpack.c.b16 %v462, %v458
    %v575 = vpack.c.b16 %v463, %v459
    %v576 = vpack.c.b16 %v464, %v460
    %v577 = vpack.c.b16 %v469, %v465
    %v578 = vpack.c.b16 %v470, %v466
    %v579 = vpack.c.b16 %v471, %v467
    %v580 = vpack.c.b16 %v472, %v468
    %v581 = vpack.c.b16 %v477, %v473
    %v582 = vpack.c.b16 %v478, %v474
    %v583 = vpack.c.b16 %v479, %v475
    %v584 = vpack.c.b16 %v480, %v476
    %v585 = vpack.c.b16 %v485, %v481
    %v586 = vpack.c.b16 %v486, %v482
    %v587 = vpack.c.b16 %v487, %v483
    %v588 = vpack.c.b16 %v488, %v484
    %v589 = vpack.c.b16 %v493, %v489
    %v590 = vpack.c.b16 %v494, %v490
    %v591 = vpack.c.b16 %v495, %v491
    %v592 = vpack.c.b16 %v496, %v492
    %v593 = vpack.c.b16 %v501, %v497
    %v594 = vpack.c.b16 %v502, %v498
    %v595 = vpack.c.b16 %v503, %v499
    %v596 = vpack.c.b16 %v504, %v500
    %v597 = vpack.c.b16 %v509, %v505
    %v598 = vpack.c.b16 %v510, %v506
    %v599 = vpack.c.b16 %v511, %v507
    %v600 = vpack.c.b16 %v512, %v508
    %v601 = vpack.c.b16 %v517, %v513
    %v602 = vpack.c.b16 %v518, %v514
    %v603 = vpack.c.b16 %v519, %v515
    %v604 = vpack.c.b16 %v520, %v516
    %v605 = vpack.c.b16 %v525, %v521
    %v606 = vpack.c.b16 %v526, %v522
    %v607 = vpack.c.b16 %v527, %v523
    %v608 = vpack.c.b16 %v528, %v524
    %v609 = vpack.c.b16 %v533, %v529
    %v610 = vpack.c.b16 %v534, %v530
    %v611 = vpack.c.b16 %v535, %v531
    %v612 = vpack.c.b16 %v536, %v532
    %v613 = vpack.c.b16 %v541, %v537
    %v614 = vpack.c.b16 %v542, %v538
    %v615 = vpack.c.b16 %v543, %v539
    %v616 = vpack.c.b16 %v544, %v540
    %v617 = vpack.c.b16 %v549, %v545
    %v618 = vpack.c.b16 %v550, %v546
    %v619 = vpack.c.b16 %v551, %v547
    %v620 = vpack.c.b16 %v552, %v548
    %v621 = vpack.c.b16 %v557, %v553
    %v622 = vpack.c.b16 %v558, %v554
    %v623 = vpack.c.b16 %v559, %v555
    %v624 = vpack.c.b16 %v560, %v556
    %689 = vmatprep.subr.bf16.mxu0 %v562
    %690 = vmatpush1.bf16.msra.mxu0 %v561
    %691 = vmatprep.subr.bf16.mxu0 %v566
    %692 = vmatpush1.bf16.msra.mxu0 %v565
    %693 = vmatprep.subr.bf16.mxu0 %v570
    %694 = vmatpush1.bf16.msra.mxu0 %v569
    %695 = vmatprep.subr.bf16.mxu0 %v574
    %696 = vmatpush1.bf16.msra.mxu0 %v573
    %697 = vmatprep.subr.bf16.mxu0 %v578
    %698 = vmatpush1.bf16.msra.mxu0 %v577
    %699 = vmatprep.subr.bf16.mxu0 %v582
    %700 = vmatpush1.bf16.msra.mxu0 %v581
    %701 = vmatprep.subr.bf16.mxu0 %v586
    %702 = vmatpush1.bf16.msra.mxu0 %v585
    %703 = vmatprep.subr.bf16.mxu0 %v590
    %704 = vmatpush1.bf16.msra.mxu0 %v589
    %705 = vmatprep.subr.bf16.mxu0 %v594
    %706 = vmatpush1.bf16.msra.mxu0 %v593
    %707 = vmatprep.subr.bf16.mxu0 %v598
    %708 = vmatpush1.bf16.msra.mxu0 %v597
    %709 = vmatprep.subr.bf16.mxu0 %v602
    %710 = vmatpush1.bf16.msra.mxu0 %v601
    %711 = vmatprep.subr.bf16.mxu0 %v606
    %712 = vmatpush1.bf16.msra.mxu0 %v605
    %713 = vmatprep.subr.bf16.mxu0 %v610
    %714 = vmatpush1.bf16.msra.mxu0 %v609
    %715 = vmatprep.subr.bf16.mxu0 %v614
    %716 = vmatpush1.bf16.msra.mxu0 %v613
    %717 = vmatprep.subr.bf16.mxu0 %v618
    %718 = vmatpush1.bf16.msra.mxu0 %v617
    %719 = vmatprep.subr.bf16.mxu0 %v622
    %720 = vmatpush1.bf16.msra.mxu0 %v621
    %721 = vmatprep.mubr.bf16.mxu0 %v283
    %722 = vmatmul.mubr.bf16.gmra.mrb[0].mxu0 %v282
    %v723 = vpop.f32.mrb[0].mxu0
    %v724 = vadd.f32 %v352, %v723
    %v725 = vpop.f32.mrb[0].mxu0
    %v726 = vadd.f32 %v356, %v725
    %v727 = vpop.f32.mrb[0].mxu0
    %v728 = vpop.f32.mrb[0].mxu0
    %729 = vdwg.mxu0
    %730 = vmatprep.subr.bf16.mxu0 %v564
    %731 = vmatpush1.bf16.msra.mxu0 %v563
    %732 = vmatprep.subr.bf16.mxu0 %v568
    %733 = vmatpush1.bf16.msra.mxu0 %v567
    %734 = vmatprep.subr.bf16.mxu0 %v572
    %735 = vmatpush1.bf16.msra.mxu0 %v571
    %736 = vmatprep.subr.bf16.mxu0 %v576
    %737 = vmatpush1.bf16.msra.mxu0 %v575
    %738 = vmatprep.subr.bf16.mxu0 %v580
    %739 = vmatpush1.bf16.msra.mxu0 %v579
    %740 = vmatprep.subr.bf16.mxu0 %v584
    %741 = vmatpush1.bf16.msra.mxu0 %v583
    %742 = vmatprep.subr.bf16.mxu0 %v588
    %743 = vmatpush1.bf16.msra.mxu0 %v587
    %744 = vmatprep.subr.bf16.mxu0 %v592
    %745 = vmatpush1.bf16.msra.mxu0 %v591
    %746 = vmatprep.subr.bf16.mxu0 %v596
    %747 = vmatpush1.bf16.msra.mxu0 %v595
    %748 = vmatprep.subr.bf16.mxu0 %v600
    %749 = vmatpush1.bf16.msra.mxu0 %v599
    %750 = vmatprep.subr.bf16.mxu0 %v604
    %751 = vmatpush1.bf16.msra.mxu0 %v603
    %752 = vmatprep.subr.bf16.mxu0 %v608
    %753 = vmatpush1.bf16.msra.mxu0 %v607
    %754 = vmatprep.subr.bf16.mxu0 %v612
    %755 = vmatpush1.bf16.msra.mxu0 %v611
    %756 = vmatprep.subr.bf16.mxu0 %v616
    %757 = vmatpush1.bf16.msra.mxu0 %v615
    %758 = vmatprep.subr.bf16.mxu0 %v620
    %759 = vmatpush1.bf16.msra.mxu0 %v619
    %760 = vmatprep.subr.bf16.mxu0 %v624
    %761 = vmatpush1.bf16.msra.mxu0 %v623
    %762 = vmatprep.mubr.bf16.mxu0 %v283
    %763 = vmatmul.mubr.bf16.gmra.mrb[0].mxu0 %v282
    %v764 = vpop.f32.mrb[0].mxu0
    %v765 = vadd.f32 %v360, %v764
    %v766 = vpop.f32.mrb[0].mxu0
    %v767 = vadd.f32 %v364, %v766
    %v768 = vpop.f32.mrb[0].mxu0
    %v769 = vpop.f32.mrb[0].mxu0
    %770 = vdwg.mxu0
    %v771 = vmax.f32 %v724, 0.0
    %v772 = vmax.f32 %v726, 0.0
    %v773 = vmax.f32 %v765, 0.0
    %v774 = vmax.f32 %v767, 0.0
    %v775 = vadd.f32 %v771, %v772
    %v776 = vadd.f32 %v775, %v773
    %v777 = vadd.f32 %v776, %v774
    %778 = vadd.xlane.f32.xlu0 %v777
    %v779 = vpop.xlane.xlu0 %778
    %v780 = vrcp.pop 512.0
    %v781 = vmul.f32 %v779, %v780
    %v782 = vmul.f32 %v771, %v771
    %v783 = vmul.f32 %v772, %v772
    %v784 = vmul.f32 %v773, %v773
    %v785 = vmul.f32 %v774, %v774
    %v786 = vadd.f32 %v782, %v783
    %v787 = vadd.f32 %v786, %v784
    %v788 = vadd.f32 %v787, %v785
    %789 = vadd.xlane.f32.xlu0 %v788
    %v790 = vpop.xlane.xlu0 %789
    %v791 = vmul.f32 %v790, %v780
    %v792 = vsub.f32 %v771, %v781
    %v793 = vsub.f32 %v772, %v781
    %v794 = vsub.f32 %v773, %v781
    %v795 = vsub.f32 %v774, %v781
    %v796 = vmul.f32 %v781, %v781
    %v797 = vsub.f32 %v791, %v796
    %v798 = vadd.f32 %v797, 1e-05
    %v799 = vrsqrt.pop %v798
    %v800 = vmul.f32 %v792, %v799
    %v801 = vmul.f32 %v793, %v799
    %v802 = vmul.f32 %v794, %v799
    %v803 = vmul.f32 %v795, %v799
    %v804 = vpack.c.bf16 %v800, %v800
    %v805 = vpack.c.bf16 %v801, %v801
    %v806 = vpack.c.bf16 %v802, %v802
    %v807 = vpack.c.bf16 %v803, %v803
    %v808 = vld [vmem:[#allocation8] sm:$0xff]
    %v809 = vld [vmem:[#allocation8 + $0x8] sm:$0xff]
    %v810 = vld [vmem:[#allocation8 + $0x10] sm:$0xff]
    %v811 = vld [vmem:[#allocation8 + $0x18] sm:$0xff]
    %v812 = vld [vmem:[#allocation8 + $0x20] sm:$0xff]
    %v813 = vld [vmem:[#allocation8 + $0x28] sm:$0xff]
    %v814 = vld [vmem:[#allocation8 + $0x30] sm:$0xff]
    %v815 = vld [vmem:[#allocation8 + $0x38] sm:$0xff]
    %v816 = vld [vmem:[#allocation8 + $0x40] sm:$0xff]
    %v817 = vld [vmem:[#allocation8 + $0x48] sm:$0xff]
    %v818 = vld [vmem:[#allocation8 + $0x50] sm:$0xff]
    %v819 = vld [vmem:[#allocation8 + $0x58] sm:$0xff]
    %v820 = vld [vmem:[#allocation8 + $0x60] sm:$0xff]
    %v821 = vld [vmem:[#allocation8 + $0x68] sm:$0xff]
    %v822 = vld [vmem:[#allocation8 + $0x70] sm:$0xff]
    %v823 = vld [vmem:[#allocation8 + $0x78] sm:$0xff]
    %v824 = vld [vmem:[#allocation8 + $0x80] sm:$0xff]
    %v825 = vld [vmem:[#allocation8 + $0x88] sm:$0xff]
    %v826 = vld [vmem:[#allocation8 + $0x90] sm:$0xff]
    %v827 = vld [vmem:[#allocation8 + $0x98] sm:$0xff]
    %v828 = vld [vmem:[#allocation8 + $0xa0] sm:$0xff]
    %v829 = vld [vmem:[#allocation8 + $0xa8] sm:$0xff]
    %v830 = vld [vmem:[#allocation8 + $0xb0] sm:$0xff]
    %v831 = vld [vmem:[#allocation8 + $0xb8] sm:$0xff]
    %v832 = vld [vmem:[#allocation8 + $0xc0] sm:$0xff]
    %v833 = vld [vmem:[#allocation8 + $0xc8] sm:$0xff]
    %v834 = vld [vmem:[#allocation8 + $0xd0] sm:$0xff]
    %v835 = vld [vmem:[#allocation8 + $0xd8] sm:$0xff]
    %v836 = vld [vmem:[#allocation8 + $0xe0] sm:$0xff]
    %v837 = vld [vmem:[#allocation8 + $0xe8] sm:$0xff]
    %v838 = vld [vmem:[#allocation8 + $0xf0] sm:$0xff]
    %v839 = vld [vmem:[#allocation8 + $0xf8] sm:$0xff]
    %v840 = vld [vmem:[#allocation8 + $0x100] sm:$0xff]
    %v841 = vld [vmem:[#allocation8 + $0x108] sm:$0xff]
    %v842 = vld [vmem:[#allocation8 + $0x110] sm:$0xff]
    %v843 = vld [vmem:[#allocation8 + $0x118] sm:$0xff]
    %v844 = vld [vmem:[#allocation8 + $0x120] sm:$0xff]
    %v845 = vld [vmem:[#allocation8 + $0x128] sm:$0xff]
    %v846 = vld [vmem:[#allocation8 + $0x130] sm:$0xff]
    %v847 = vld [vmem:[#allocation8 + $0x138] sm:$0xff]
    %v848 = vld [vmem:[#allocation8 + $0x140] sm:$0xff]
    %v849 = vld [vmem:[#allocation8 + $0x148] sm:$0xff]
    %v850 = vld [vmem:[#allocation8 + $0x150] sm:$0xff]
    %v851 = vld [vmem:[#allocation8 + $0x158] sm:$0xff]
    %v852 = vld [vmem:[#allocation8 + $0x160] sm:$0xff]
    %v853 = vld [vmem:[#allocation8 + $0x168] sm:$0xff]
    %v854 = vld [vmem:[#allocation8 + $0x170] sm:$0xff]
    %v855 = vld [vmem:[#allocation8 + $0x178] sm:$0xff]
    %v856 = vld [vmem:[#allocation8 + $0x180] sm:$0xff]
    %v857 = vld [vmem:[#allocation8 + $0x188] sm:$0xff]
    %v858 = vld [vmem:[#allocation8 + $0x190] sm:$0xff]
    %v859 = vld [vmem:[#allocation8 + $0x198] sm:$0xff]
    %v860 = vld [vmem:[#allocation8 + $0x1a0] sm:$0xff]
    %v861 = vld [vmem:[#allocation8 + $0x1a8] sm:$0xff]
    %v862 = vld [vmem:[#allocation8 + $0x1b0] sm:$0xff]
    %v863 = vld [vmem:[#allocation8 + $0x1b8] sm:$0xff]
    %v864 = vld [vmem:[#allocation8 + $0x1c0] sm:$0xff]
    %v865 = vld [vmem:[#allocation8 + $0x1c8] sm:$0xff]
    %v866 = vld [vmem:[#allocation8 + $0x1d0] sm:$0xff]
    %v867 = vld [vmem:[#allocation8 + $0x1d8] sm:$0xff]
    %v868 = vld [vmem:[#allocation8 + $0x1e0] sm:$0xff]
    %v869 = vld [vmem:[#allocation8 + $0x1e8] sm:$0xff]
    %v870 = vld [vmem:[#allocation8 + $0x1f0] sm:$0xff]
    %v871 = vld [vmem:[#allocation8 + $0x1f8] sm:$0xff]
    %v872 = vld [vmem:[#allocation8 + $0x200] sm:$0xff]
    %v873 = vld [vmem:[#allocation8 + $0x208] sm:$0xff]
    %v874 = vld [vmem:[#allocation8 + $0x210] sm:$0xff]
    %v875 = vld [vmem:[#allocation8 + $0x218] sm:$0xff]
    %v876 = vld [vmem:[#allocation8 + $0x220] sm:$0xff]
    %v877 = vld [vmem:[#allocation8 + $0x228] sm:$0xff]
    %v878 = vld [vmem:[#allocation8 + $0x230] sm:$0xff]
    %v879 = vld [vmem:[#allocation8 + $0x238] sm:$0xff]
    %v880 = vld [vmem:[#allocation8 + $0x240] sm:$0xff]
    %v881 = vld [vmem:[#allocation8 + $0x248] sm:$0xff]
    %v882 = vld [vmem:[#allocation8 + $0x250] sm:$0xff]
    %v883 = vld [vmem:[#allocation8 + $0x258] sm:$0xff]
    %v884 = vld [vmem:[#allocation8 + $0x260] sm:$0xff]
    %v885 = vld [vmem:[#allocation8 + $0x268] sm:$0xff]
    %v886 = vld [vmem:[#allocation8 + $0x270] sm:$0xff]
    %v887 = vld [vmem:[#allocation8 + $0x278] sm:$0xff]
    %v888 = vld [vmem:[#allocation8 + $0x280] sm:$0xff]
    %v889 = vld [vmem:[#allocation8 + $0x288] sm:$0xff]
    %v890 = vld [vmem:[#allocation8 + $0x290] sm:$0xff]
    %v891 = vld [vmem:[#allocation8 + $0x298] sm:$0xff]
    %v892 = vld [vmem:[#allocation8 + $0x2a0] sm:$0xff]
    %v893 = vld [vmem:[#allocation8 + $0x2a8] sm:$0xff]
    %v894 = vld [vmem:[#allocation8 + $0x2b0] sm:$0xff]
    %v895 = vld [vmem:[#allocation8 + $0x2b8] sm:$0xff]
    %v896 = vld [vmem:[#allocation8 + $0x2c0] sm:$0xff]
    %v897 = vld [vmem:[#allocation8 + $0x2c8] sm:$0xff]
    %v898 = vld [vmem:[#allocation8 + $0x2d0] sm:$0xff]
    %v899 = vld [vmem:[#allocation8 + $0x2d8] sm:$0xff]
    %v900 = vld [vmem:[#allocation8 + $0x2e0] sm:$0xff]
    %v901 = vld [vmem:[#allocation8 + $0x2e8] sm:$0xff]
    %v902 = vld [vmem:[#allocation8 + $0x2f0] sm:$0xff]
    %v903 = vld [vmem:[#allocation8 + $0x2f8] sm:$0xff]
    %v904 = vld [vmem:[#allocation8 + $0x300] sm:$0xff]
    %v905 = vld [vmem:[#allocation8 + $0x308] sm:$0xff]
    %v906 = vld [vmem:[#allocation8 + $0x310] sm:$0xff]
    %v907 = vld [vmem:[#allocation8 + $0x318] sm:$0xff]
    %v908 = vld [vmem:[#allocation8 + $0x320] sm:$0xff]
    %v909 = vld [vmem:[#allocation8 + $0x328] sm:$0xff]
    %v910 = vld [vmem:[#allocation8 + $0x330] sm:$0xff]
    %v911 = vld [vmem:[#allocation8 + $0x338] sm:$0xff]
    %v912 = vld [vmem:[#allocation8 + $0x340] sm:$0xff]
    %v913 = vld [vmem:[#allocation8 + $0x348] sm:$0xff]
    %v914 = vld [vmem:[#allocation8 + $0x350] sm:$0xff]
    %v915 = vld [vmem:[#allocation8 + $0x358] sm:$0xff]
    %v916 = vld [vmem:[#allocation8 + $0x360] sm:$0xff]
    %v917 = vld [vmem:[#allocation8 + $0x368] sm:$0xff]
    %v918 = vld [vmem:[#allocation8 + $0x370] sm:$0xff]
    %v919 = vld [vmem:[#allocation8 + $0x378] sm:$0xff]
    %v920 = vld [vmem:[#allocation8 + $0x380] sm:$0xff]
    %v921 = vld [vmem:[#allocation8 + $0x388] sm:$0xff]
    %v922 = vld [vmem:[#allocation8 + $0x390] sm:$0xff]
    %v923 = vld [vmem:[#allocation8 + $0x398] sm:$0xff]
    %v924 = vld [vmem:[#allocation8 + $0x3a0] sm:$0xff]
    %v925 = vld [vmem:[#allocation8 + $0x3a8] sm:$0xff]
    %v926 = vld [vmem:[#allocation8 + $0x3b0] sm:$0xff]
    %v927 = vld [vmem:[#allocation8 + $0x3b8] sm:$0xff]
    %v928 = vld [vmem:[#allocation8 + $0x3c0] sm:$0xff]
    %v929 = vld [vmem:[#allocation8 + $0x3c8] sm:$0xff]
    %v930 = vld [vmem:[#allocation8 + $0x3d0] sm:$0xff]
    %v931 = vld [vmem:[#allocation8 + $0x3d8] sm:$0xff]
    %v932 = vld [vmem:[#allocation8 + $0x3e0] sm:$0xff]
    %v933 = vld [vmem:[#allocation8 + $0x3e8] sm:$0xff]
    %v934 = vld [vmem:[#allocation8 + $0x3f0] sm:$0xff]
    %v935 = vld [vmem:[#allocation8 + $0x3f8] sm:$0xff]
    %v937 = vlaneseq
    %v938 = vshrl.u32 %v937, 7
    %v939 = vsub.s32 0, %v938
    %v940 = vrot.slane %v107, %v939
    %v941 = vlaneseq
    %v942 = vshrl.u32 %v941, 7
    %v943 = vsub.s32 1, %v942
    %v944 = vrot.slane %v107, %v943
    %v945 = vlaneseq
    %v946 = vshrl.u32 %v945, 7
    %v947 = vsub.s32 2, %v946
    %v948 = vrot.slane %v107, %v947
    %v949 = vlaneseq
    %v950 = vshrl.u32 %v949, 7
    %v951 = vsub.s32 3, %v950
    %v952 = vrot.slane %v107, %v951
    %v1085 = vunpack.c.l.b16 %v808
    %v1086 = vunpack.c.h.b16 %v808
    %v1087 = vunpack.c.l.b16 %v809
    %v1088 = vunpack.c.h.b16 %v809
    %v1089 = vunpack.c.l.b16 %v810
    %v1090 = vunpack.c.h.b16 %v810
    %v1091 = vunpack.c.l.b16 %v811
    %v1092 = vunpack.c.h.b16 %v811
    %v1093 = vunpack.c.l.b16 %v812
    %v1094 = vunpack.c.h.b16 %v812
    %v1095 = vunpack.c.l.b16 %v813
    %v1096 = vunpack.c.h.b16 %v813
    %v1097 = vunpack.c.l.b16 %v814
    %v1098 = vunpack.c.h.b16 %v814
    %v1099 = vunpack.c.l.b16 %v815
    %v1100 = vunpack.c.h.b16 %v815
    %v1101 = vunpack.c.l.b16 %v816
    %v1102 = vunpack.c.h.b16 %v816
    %v1103 = vunpack.c.l.b16 %v817
    %v1104 = vunpack.c.h.b16 %v817
    %v1105 = vunpack.c.l.b16 %v818
    %v1106 = vunpack.c.h.b16 %v818
    %v1107 = vunpack.c.l.b16 %v819
    %v1108 = vunpack.c.h.b16 %v819
    %v1109 = vunpack.c.l.b16 %v820
    %v1110 = vunpack.c.h.b16 %v820
    %v1111 = vunpack.c.l.b16 %v821
    %v1112 = vunpack.c.h.b16 %v821
    %v1113 = vunpack.c.l.b16 %v822
    %v1114 = vunpack.c.h.b16 %v822
    %v1115 = vunpack.c.l.b16 %v823
    %v1116 = vunpack.c.h.b16 %v823
    %v1117 = vunpack.c.l.b16 %v824
    %v1118 = vunpack.c.h.b16 %v824
    %v1119 = vunpack.c.l.b16 %v825
    %v1120 = vunpack.c.h.b16 %v825
    %v1121 = vunpack.c.l.b16 %v826
    %v1122 = vunpack.c.h.b16 %v826
    %v1123 = vunpack.c.l.b16 %v827
    %v1124 = vunpack.c.h.b16 %v827
    %v1125 = vunpack.c.l.b16 %v828
    %v1126 = vunpack.c.h.b16 %v828
    %v1127 = vunpack.c.l.b16 %v829
    %v1128 = vunpack.c.h.b16 %v829
    %v1129 = vunpack.c.l.b16 %v830
    %v1130 = vunpack.c.h.b16 %v830
    %v1131 = vunpack.c.l.b16 %v831
    %v1132 = vunpack.c.h.b16 %v831
    %v1133 = vunpack.c.l.b16 %v832
    %v1134 = vunpack.c.h.b16 %v832
    %v1135 = vunpack.c.l.b16 %v833
    %v1136 = vunpack.c.h.b16 %v833
    %v1137 = vunpack.c.l.b16 %v834
    %v1138 = vunpack.c.h.b16 %v834
    %v1139 = vunpack.c.l.b16 %v835
    %v1140 = vunpack.c.h.b16 %v835
    %v1141 = vunpack.c.l.b16 %v836
    %v1142 = vunpack.c.h.b16 %v836
    %v1143 = vunpack.c.l.b16 %v837
    %v1144 = vunpack.c.h.b16 %v837
    %v1145 = vunpack.c.l.b16 %v838
    %v1146 = vunpack.c.h.b16 %v838
    %v1147 = vunpack.c.l.b16 %v839
    %v1148 = vunpack.c.h.b16 %v839
    %v1149 = vunpack.c.l.b16 %v840
    %v1150 = vunpack.c.h.b16 %v840
    %v1151 = vunpack.c.l.b16 %v841
    %v1152 = vunpack.c.h.b16 %v841
    %v1153 = vunpack.c.l.b16 %v842
    %v1154 = vunpack.c.h.b16 %v842
    %v1155 = vunpack.c.l.b16 %v843
    %v1156 = vunpack.c.h.b16 %v843
    %v1157 = vunpack.c.l.b16 %v844
    %v1158 = vunpack.c.h.b16 %v844
    %v1159 = vunpack.c.l.b16 %v845
    %v1160 = vunpack.c.h.b16 %v845
    %v1161 = vunpack.c.l.b16 %v846
    %v1162 = vunpack.c.h.b16 %v846
    %v1163 = vunpack.c.l.b16 %v847
    %v1164 = vunpack.c.h.b16 %v847
    %v1165 = vunpack.c.l.b16 %v848
    %v1166 = vunpack.c.h.b16 %v848
    %v1167 = vunpack.c.l.b16 %v849
    %v1168 = vunpack.c.h.b16 %v849
    %v1169 = vunpack.c.l.b16 %v850
    %v1170 = vunpack.c.h.b16 %v850
    %v1171 = vunpack.c.l.b16 %v851
    %v1172 = vunpack.c.h.b16 %v851
    %v1173 = vunpack.c.l.b16 %v852
    %v1174 = vunpack.c.h.b16 %v852
    %v1175 = vunpack.c.l.b16 %v853
    %v1176 = vunpack.c.h.b16 %v853
    %v1177 = vunpack.c.l.b16 %v854
    %v1178 = vunpack.c.h.b16 %v854
    %v1179 = vunpack.c.l.b16 %v855
    %v1180 = vunpack.c.h.b16 %v855
    %v1181 = vunpack.c.l.b16 %v856
    %v1182 = vunpack.c.h.b16 %v856
    %v1183 = vunpack.c.l.b16 %v857
    %v1184 = vunpack.c.h.b16 %v857
    %v1185 = vunpack.c.l.b16 %v858
    %v1186 = vunpack.c.h.b16 %v858
    %v1187 = vunpack.c.l.b16 %v859
    %v1188 = vunpack.c.h.b16 %v859
    %v1189 = vunpack.c.l.b16 %v860
    %v1190 = vunpack.c.h.b16 %v860
    %v1191 = vunpack.c.l.b16 %v861
    %v1192 = vunpack.c.h.b16 %v861
    %v1193 = vunpack.c.l.b16 %v862
    %v1194 = vunpack.c.h.b16 %v862
    %v1195 = vunpack.c.l.b16 %v863
    %v1196 = vunpack.c.h.b16 %v863
    %v1197 = vunpack.c.l.b16 %v864
    %v1198 = vunpack.c.h.b16 %v864
    %v1199 = vunpack.c.l.b16 %v865
    %v1200 = vunpack.c.h.b16 %v865
    %v1201 = vunpack.c.l.b16 %v866
    %v1202 = vunpack.c.h.b16 %v866
    %v1203 = vunpack.c.l.b16 %v867
    %v1204 = vunpack.c.h.b16 %v867
    %v1205 = vunpack.c.l.b16 %v868
    %v1206 = vunpack.c.h.b16 %v868
    %v1207 = vunpack.c.l.b16 %v869
    %v1208 = vunpack.c.h.b16 %v869
    %v1209 = vunpack.c.l.b16 %v870
    %v1210 = vunpack.c.h.b16 %v870
    %v1211 = vunpack.c.l.b16 %v871
    %v1212 = vunpack.c.h.b16 %v871
    %v1213 = vunpack.c.l.b16 %v872
    %v1214 = vunpack.c.h.b16 %v872
    %v1215 = vunpack.c.l.b16 %v873
    %v1216 = vunpack.c.h.b16 %v873
    %v1217 = vunpack.c.l.b16 %v874
    %v1218 = vunpack.c.h.b16 %v874
    %v1219 = vunpack.c.l.b16 %v875
    %v1220 = vunpack.c.h.b16 %v875
    %v1221 = vunpack.c.l.b16 %v876
    %v1222 = vunpack.c.h.b16 %v876
    %v1223 = vunpack.c.l.b16 %v877
    %v1224 = vunpack.c.h.b16 %v877
    %v1225 = vunpack.c.l.b16 %v878
    %v1226 = vunpack.c.h.b16 %v878
    %v1227 = vunpack.c.l.b16 %v879
    %v1228 = vunpack.c.h.b16 %v879
    %v1229 = vunpack.c.l.b16 %v880
    %v1230 = vunpack.c.h.b16 %v880
    %v1231 = vunpack.c.l.b16 %v881
    %v1232 = vunpack.c.h.b16 %v881
    %v1233 = vunpack.c.l.b16 %v882
    %v1234 = vunpack.c.h.b16 %v882
    %v1235 = vunpack.c.l.b16 %v883
    %v1236 = vunpack.c.h.b16 %v883
    %v1237 = vunpack.c.l.b16 %v884
    %v1238 = vunpack.c.h.b16 %v884
    %v1239 = vunpack.c.l.b16 %v885
    %v1240 = vunpack.c.h.b16 %v885
    %v1241 = vunpack.c.l.b16 %v886
    %v1242 = vunpack.c.h.b16 %v886
    %v1243 = vunpack.c.l.b16 %v887
    %v1244 = vunpack.c.h.b16 %v887
    %v1245 = vunpack.c.l.b16 %v888
    %v1246 = vunpack.c.h.b16 %v888
    %v1247 = vunpack.c.l.b16 %v889
    %v1248 = vunpack.c.h.b16 %v889
    %v1249 = vunpack.c.l.b16 %v890
    %v1250 = vunpack.c.h.b16 %v890
    %v1251 = vunpack.c.l.b16 %v891
    %v1252 = vunpack.c.h.b16 %v891
    %v1253 = vunpack.c.l.b16 %v892
    %v1254 = vunpack.c.h.b16 %v892
    %v1255 = vunpack.c.l.b16 %v893
    %v1256 = vunpack.c.h.b16 %v893
    %v1257 = vunpack.c.l.b16 %v894
    %v1258 = vunpack.c.h.b16 %v894
    %v1259 = vunpack.c.l.b16 %v895
    %v1260 = vunpack.c.h.b16 %v895
    %v1261 = vunpack.c.l.b16 %v896
    %v1262 = vunpack.c.h.b16 %v896
    %v1263 = vunpack.c.l.b16 %v897
    %v1264 = vunpack.c.h.b16 %v897
    %v1265 = vunpack.c.l.b16 %v898
    %v1266 = vunpack.c.h.b16 %v898
    %v1267 = vunpack.c.l.b16 %v899
    %v1268 = vunpack.c.h.b16 %v899
    %v1269 = vunpack.c.l.b16 %v900
    %v1270 = vunpack.c.h.b16 %v900
    %v1271 = vunpack.c.l.b16 %v901
    %v1272 = vunpack.c.h.b16 %v901
    %v1273 = vunpack.c.l.b16 %v902
    %v1274 = vunpack.c.h.b16 %v902
    %v1275 = vunpack.c.l.b16 %v903
    %v1276 = vunpack.c.h.b16 %v903
    %v1277 = vunpack.c.l.b16 %v904
    %v1278 = vunpack.c.h.b16 %v904
    %v1279 = vunpack.c.l.b16 %v905
    %v1280 = vunpack.c.h.b16 %v905
    %v1281 = vunpack.c.l.b16 %v906
    %v1282 = vunpack.c.h.b16 %v906
    %v1283 = vunpack.c.l.b16 %v907
    %v1284 = vunpack.c.h.b16 %v907
    %v1285 = vunpack.c.l.b16 %v908
    %v1286 = vunpack.c.h.b16 %v908
    %v1287 = vunpack.c.l.b16 %v909
    %v1288 = vunpack.c.h.b16 %v909
    %v1289 = vunpack.c.l.b16 %v910
    %v1290 = vunpack.c.h.b16 %v910
    %v1291 = vunpack.c.l.b16 %v911
    %v1292 = vunpack.c.h.b16 %v911
    %v1293 = vunpack.c.l.b16 %v912
    %v1294 = vunpack.c.h.b16 %v912
    %v1295 = vunpack.c.l.b16 %v913
    %v1296 = vunpack.c.h.b16 %v913
    %v1297 = vunpack.c.l.b16 %v914
    %v1298 = vunpack.c.h.b16 %v914
    %v1299 = vunpack.c.l.b16 %v915
    %v1300 = vunpack.c.h.b16 %v915
    %v1301 = vunpack.c.l.b16 %v916
    %v1302 = vunpack.c.h.b16 %v916
    %v1303 = vunpack.c.l.b16 %v917
    %v1304 = vunpack.c.h.b16 %v917
    %v1305 = vunpack.c.l.b16 %v918
    %v1306 = vunpack.c.h.b16 %v918
    %v1307 = vunpack.c.l.b16 %v919
    %v1308 = vunpack.c.h.b16 %v919
    %v1309 = vunpack.c.l.b16 %v920
    %v1310 = vunpack.c.h.b16 %v920
    %v1311 = vunpack.c.l.b16 %v921
    %v1312 = vunpack.c.h.b16 %v921
    %v1313 = vunpack.c.l.b16 %v922
    %v1314 = vunpack.c.h.b16 %v922
    %v1315 = vunpack.c.l.b16 %v923
    %v1316 = vunpack.c.h.b16 %v923
    %v1317 = vunpack.c.l.b16 %v924
    %v1318 = vunpack.c.h.b16 %v924
    %v1319 = vunpack.c.l.b16 %v925
    %v1320 = vunpack.c.h.b16 %v925
    %v1321 = vunpack.c.l.b16 %v926
    %v1322 = vunpack.c.h.b16 %v926
    %v1323 = vunpack.c.l.b16 %v927
    %v1324 = vunpack.c.h.b16 %v927
    %v1325 = vunpack.c.l.b16 %v928
    %v1326 = vunpack.c.h.b16 %v928
    %v1327 = vunpack.c.l.b16 %v929
    %v1328 = vunpack.c.h.b16 %v929
    %v1329 = vunpack.c.l.b16 %v930
    %v1330 = vunpack.c.h.b16 %v930
    %v1331 = vunpack.c.l.b16 %v931
    %v1332 = vunpack.c.h.b16 %v931
    %v1333 = vunpack.c.l.b16 %v932
    %v1334 = vunpack.c.h.b16 %v932
    %v1335 = vunpack.c.l.b16 %v933
    %v1336 = vunpack.c.h.b16 %v933
    %v1337 = vunpack.c.l.b16 %v934
    %v1338 = vunpack.c.h.b16 %v934
    %v1339 = vunpack.c.l.b16 %v935
    %v1340 = vunpack.c.h.b16 %v935
    %v1341 = vpack.c.b16 %v1089, %v1085
    %v1342 = vpack.c.b16 %v1090, %v1086
    %v1343 = vpack.c.b16 %v1091, %v1087
    %v1344 = vpack.c.b16 %v1092, %v1088
    %v1345 = vpack.c.b16 %v1097, %v1093
    %v1346 = vpack.c.b16 %v1098, %v1094
    %v1347 = vpack.c.b16 %v1099, %v1095
    %v1348 = vpack.c.b16 %v1100, %v1096
    %v1349 = vpack.c.b16 %v1105, %v1101
    %v1350 = vpack.c.b16 %v1106, %v1102
    %v1351 = vpack.c.b16 %v1107, %v1103
    %v1352 = vpack.c.b16 %v1108, %v1104
    %v1353 = vpack.c.b16 %v1113, %v1109
    %v1354 = vpack.c.b16 %v1114, %v1110
    %v1355 = vpack.c.b16 %v1115, %v1111
    %v1356 = vpack.c.b16 %v1116, %v1112
    %v1357 = vpack.c.b16 %v1121, %v1117
    %v1358 = vpack.c.b16 %v1122, %v1118
    %v1359 = vpack.c.b16 %v1123, %v1119
    %v1360 = vpack.c.b16 %v1124, %v1120
    %v1361 = vpack.c.b16 %v1129, %v1125
    %v1362 = vpack.c.b16 %v1130, %v1126
    %v1363 = vpack.c.b16 %v1131, %v1127
    %v1364 = vpack.c.b16 %v1132, %v1128
    %v1365 = vpack.c.b16 %v1137, %v1133
    %v1366 = vpack.c.b16 %v1138, %v1134
    %v1367 = vpack.c.b16 %v1139, %v1135
    %v1368 = vpack.c.b16 %v1140, %v1136
    %v1369 = vpack.c.b16 %v1145, %v1141
    %v1370 = vpack.c.b16 %v1146, %v1142
    %v1371 = vpack.c.b16 %v1147, %v1143
    %v1372 = vpack.c.b16 %v1148, %v1144
    %v1373 = vpack.c.b16 %v1153, %v1149
    %v1374 = vpack.c.b16 %v1154, %v1150
    %v1375 = vpack.c.b16 %v1155, %v1151
    %v1376 = vpack.c.b16 %v1156, %v1152
    %v1377 = vpack.c.b16 %v1161, %v1157
    %v1378 = vpack.c.b16 %v1162, %v1158
    %v1379 = vpack.c.b16 %v1163, %v1159
    %v1380 = vpack.c.b16 %v1164, %v1160
    %v1381 = vpack.c.b16 %v1169, %v1165
    %v1382 = vpack.c.b16 %v1170, %v1166
    %v1383 = vpack.c.b16 %v1171, %v1167
    %v1384 = vpack.c.b16 %v1172, %v1168
    %v1385 = vpack.c.b16 %v1177, %v1173
    %v1386 = vpack.c.b16 %v1178, %v1174
    %v1387 = vpack.c.b16 %v1179, %v1175
    %v1388 = vpack.c.b16 %v1180, %v1176
    %v1389 = vpack.c.b16 %v1185, %v1181
    %v1390 = vpack.c.b16 %v1186, %v1182
    %v1391 = vpack.c.b16 %v1187, %v1183
    %v1392 = vpack.c.b16 %v1188, %v1184
    %v1393 = vpack.c.b16 %v1193, %v1189
    %v1394 = vpack.c.b16 %v1194, %v1190
    %v1395 = vpack.c.b16 %v1195, %v1191
    %v1396 = vpack.c.b16 %v1196, %v1192
    %v1397 = vpack.c.b16 %v1201, %v1197
    %v1398 = vpack.c.b16 %v1202, %v1198
    %v1399 = vpack.c.b16 %v1203, %v1199
    %v1400 = vpack.c.b16 %v1204, %v1200
    %v1401 = vpack.c.b16 %v1209, %v1205
    %v1402 = vpack.c.b16 %v1210, %v1206
    %v1403 = vpack.c.b16 %v1211, %v1207
    %v1404 = vpack.c.b16 %v1212, %v1208
    %v1405 = vpack.c.b16 %v1217, %v1213
    %v1406 = vpack.c.b16 %v1218, %v1214
    %v1407 = vpack.c.b16 %v1219, %v1215
    %v1408 = vpack.c.b16 %v1220, %v1216
    %v1409 = vpack.c.b16 %v1225, %v1221
    %v1410 = vpack.c.b16 %v1226, %v1222
    %v1411 = vpack.c.b16 %v1227, %v1223
    %v1412 = vpack.c.b16 %v1228, %v1224
    %v1413 = vpack.c.b16 %v1233, %v1229
    %v1414 = vpack.c.b16 %v1234, %v1230
    %v1415 = vpack.c.b16 %v1235, %v1231
    %v1416 = vpack.c.b16 %v1236, %v1232
    %v1417 = vpack.c.b16 %v1241, %v1237
    %v1418 = vpack.c.b16 %v1242, %v1238
    %v1419 = vpack.c.b16 %v1243, %v1239
    %v1420 = vpack.c.b16 %v1244, %v1240
    %v1421 = vpack.c.b16 %v1249, %v1245
    %v1422 = vpack.c.b16 %v1250, %v1246
    %v1423 = vpack.c.b16 %v1251, %v1247
    %v1424 = vpack.c.b16 %v1252, %v1248
    %v1425 = vpack.c.b16 %v1257, %v1253
    %v1426 = vpack.c.b16 %v1258, %v1254
    %v1427 = vpack.c.b16 %v1259, %v1255
    %v1428 = vpack.c.b16 %v1260, %v1256
    %v1429 = vpack.c.b16 %v1265, %v1261
    %v1430 = vpack.c.b16 %v1266, %v1262
    %v1431 = vpack.c.b16 %v1267, %v1263
    %v1432 = vpack.c.b16 %v1268, %v1264
    %v1433 = vpack.c.b16 %v1273, %v1269
    %v1434 = vpack.c.b16 %v1274, %v1270
    %v1435 = vpack.c.b16 %v1275, %v1271
    %v1436 = vpack.c.b16 %v1276, %v1272
    %v1437 = vpack.c.b16 %v1281, %v1277
    %v1438 = vpack.c.b16 %v1282, %v1278
    %v1439 = vpack.c.b16 %v1283, %v1279
    %v1440 = vpack.c.b16 %v1284, %v1280
    %v1441 = vpack.c.b16 %v1289, %v1285
    %v1442 = vpack.c.b16 %v1290, %v1286
    %v1443 = vpack.c.b16 %v1291, %v1287
    %v1444 = vpack.c.b16 %v1292, %v1288
    %v1445 = vpack.c.b16 %v1297, %v1293
    %v1446 = vpack.c.b16 %v1298, %v1294
    %v1447 = vpack.c.b16 %v1299, %v1295
    %v1448 = vpack.c.b16 %v1300, %v1296
    %v1449 = vpack.c.b16 %v1305, %v1301
    %v1450 = vpack.c.b16 %v1306, %v1302
    %v1451 = vpack.c.b16 %v1307, %v1303
    %v1452 = vpack.c.b16 %v1308, %v1304
    %v1453 = vpack.c.b16 %v1313, %v1309
    %v1454 = vpack.c.b16 %v1314, %v1310
    %v1455 = vpack.c.b16 %v1315, %v1311
    %v1456 = vpack.c.b16 %v1316, %v1312
    %v1457 = vpack.c.b16 %v1321, %v1317
    %v1458 = vpack.c.b16 %v1322, %v1318
    %v1459 = vpack.c.b16 %v1323, %v1319
    %v1460 = vpack.c.b16 %v1324, %v1320
    %v1461 = vpack.c.b16 %v1329, %v1325
    %v1462 = vpack.c.b16 %v1330, %v1326
    %v1463 = vpack.c.b16 %v1331, %v1327
    %v1464 = vpack.c.b16 %v1332, %v1328
    %v1465 = vpack.c.b16 %v1337, %v1333
    %v1466 = vpack.c.b16 %v1338, %v1334
    %v1467 = vpack.c.b16 %v1339, %v1335
    %v1468 = vpack.c.b16 %v1340, %v1336
    %1597 = vmatprep.subr.bf16.mxu0 %v1342
    %1598 = vmatpush1.bf16.msra.mxu0 %v1341
    %1599 = vmatprep.subr.bf16.mxu0 %v1346
    %1600 = vmatpush1.bf16.msra.mxu0 %v1345
    %1601 = vmatprep.subr.bf16.mxu0 %v1350
    %1602 = vmatpush1.bf16.msra.mxu0 %v1349
    %1603 = vmatprep.subr.bf16.mxu0 %v1354
    %1604 = vmatpush1.bf16.msra.mxu0 %v1353
    %1605 = vmatprep.subr.bf16.mxu0 %v1358
    %1606 = vmatpush1.bf16.msra.mxu0 %v1357
    %1607 = vmatprep.subr.bf16.mxu0 %v1362
    %1608 = vmatpush1.bf16.msra.mxu0 %v1361
    %1609 = vmatprep.subr.bf16.mxu0 %v1366
    %1610 = vmatpush1.bf16.msra.mxu0 %v1365
    %1611 = vmatprep.subr.bf16.mxu0 %v1370
    %1612 = vmatpush1.bf16.msra.mxu0 %v1369
    %1613 = vmatprep.subr.bf16.mxu0 %v1374
    %1614 = vmatpush1.bf16.msra.mxu0 %v1373
    %1615 = vmatprep.subr.bf16.mxu0 %v1378
    %1616 = vmatpush1.bf16.msra.mxu0 %v1377
    %1617 = vmatprep.subr.bf16.mxu0 %v1382
    %1618 = vmatpush1.bf16.msra.mxu0 %v1381
    %1619 = vmatprep.subr.bf16.mxu0 %v1386
    %1620 = vmatpush1.bf16.msra.mxu0 %v1385
    %1621 = vmatprep.subr.bf16.mxu0 %v1390
    %1622 = vmatpush1.bf16.msra.mxu0 %v1389
    %1623 = vmatprep.subr.bf16.mxu0 %v1394
    %1624 = vmatpush1.bf16.msra.mxu0 %v1393
    %1625 = vmatprep.subr.bf16.mxu0 %v1398
    %1626 = vmatpush1.bf16.msra.mxu0 %v1397
    %1627 = vmatprep.subr.bf16.mxu0 %v1402
    %1628 = vmatpush1.bf16.msra.mxu0 %v1401
    %1629 = vmatprep.mubr.bf16.mxu0 %v805
    %1630 = vmatmul.mubr.bf16.gmra.mrb[0].mxu0 %v804
    %v1631 = vpop.f32.mrb[0].mxu0
    %v1632 = vadd.f32 %v940, %v1631
    %v1633 = vpop.f32.mrb[0].mxu0
    %v1634 = vadd.f32 %v944, %v1633
    %v1635 = vpop.f32.mrb[0].mxu0
    %v1636 = vpop.f32.mrb[0].mxu0
    %1637 = vdwg.mxu0
    %1638 = vmatprep.subr.bf16.mxu0 %v1406
    %1639 = vmatpush1.bf16.msra.mxu0 %v1405
    %1640 = vmatprep.subr.bf16.mxu0 %v1410
    %1641 = vmatpush1.bf16.msra.mxu0 %v1409
    %1642 = vmatprep.subr.bf16.mxu0 %v1414
    %1643 = vmatpush1.bf16.msra.mxu0 %v1413
    %1644 = vmatprep.subr.bf16.mxu0 %v1418
    %1645 = vmatpush1.bf16.msra.mxu0 %v1417
    %1646 = vmatprep.subr.bf16.mxu0 %v1422
    %1647 = vmatpush1.bf16.msra.mxu0 %v1421
    %1648 = vmatprep.subr.bf16.mxu0 %v1426
    %1649 = vmatpush1.bf16.msra.mxu0 %v1425
    %1650 = vmatprep.subr.bf16.mxu0 %v1430
    %1651 = vmatpush1.bf16.msra.mxu0 %v1429
    %1652 = vmatprep.subr.bf16.mxu0 %v1434
    %1653 = vmatpush1.bf16.msra.mxu0 %v1433
    %1654 = vmatprep.subr.bf16.mxu0 %v1438
    %1655 = vmatpush1.bf16.msra.mxu0 %v1437
    %1656 = vmatprep.subr.bf16.mxu0 %v1442
    %1657 = vmatpush1.bf16.msra.mxu0 %v1441
    %1658 = vmatprep.subr.bf16.mxu0 %v1446
    %1659 = vmatpush1.bf16.msra.mxu0 %v1445
    %1660 = vmatprep.subr.bf16.mxu0 %v1450
    %1661 = vmatpush1.bf16.msra.mxu0 %v1449
    %1662 = vmatprep.subr.bf16.mxu0 %v1454
    %1663 = vmatpush1.bf16.msra.mxu0 %v1453
    %1664 = vmatprep.subr.bf16.mxu0 %v1458
    %1665 = vmatpush1.bf16.msra.mxu0 %v1457
    %1666 = vmatprep.subr.bf16.mxu0 %v1462
    %1667 = vmatpush1.bf16.msra.mxu0 %v1461
    %1668 = vmatprep.subr.bf16.mxu0 %v1466
    %1669 = vmatpush1.bf16.msra.mxu0 %v1465
    %1670 = vmatprep.mubr.bf16.mxu0 %v807
    %1671 = vmatmul.mubr.bf16.gmra.mrb[0].mxu0 %v806
    %v1672 = vpop.f32.mrb[0].mxu0
    %v1673 = vadd.f32 %v1632, %v1672
    %v1674 = vpop.f32.mrb[0].mxu0
    %v1675 = vadd.f32 %v1634, %v1674
    %v1676 = vpop.f32.mrb[0].mxu0
    %v1677 = vpop.f32.mrb[0].mxu0
    %1678 = vdwg.mxu0
    %1679 = vmatprep.subr.bf16.mxu0 %v1344
    %1680 = vmatpush1.bf16.msra.mxu0 %v1343
    %1681 = vmatprep.subr.bf16.mxu0 %v1348
    %1682 = vmatpush1.bf16.msra.mxu0 %v1347
    %1683 = vmatprep.subr.bf16.mxu0 %v1352
    %1684 = vmatpush1.bf16.msra.mxu0 %v1351
    %1685 = vmatprep.subr.bf16.mxu0 %v1356
    %1686 = vmatpush1.bf16.msra.mxu0 %v1355
    %1687 = vmatprep.subr.bf16.mxu0 %v1360
    %1688 = vmatpush1.bf16.msra.mxu0 %v1359
    %1689 = vmatprep.subr.bf16.mxu0 %v1364
    %1690 = vmatpush1.bf16.msra.mxu0 %v1363
    %1691 = vmatprep.subr.bf16.mxu0 %v1368
    %1692 = vmatpush1.bf16.msra.mxu0 %v1367
    %1693 = vmatprep.subr.bf16.mxu0 %v1372
    %1694 = vmatpush1.bf16.msra.mxu0 %v1371
    %1695 = vmatprep.subr.bf16.mxu0 %v1376
    %1696 = vmatpush1.bf16.msra.mxu0 %v1375
    %1697 = vmatprep.subr.bf16.mxu0 %v1380
    %1698 = vmatpush1.bf16.msra.mxu0 %v1379
    %1699 = vmatprep.subr.bf16.mxu0 %v1384
    %1700 = vmatpush1.bf16.msra.mxu0 %v1383
    %1701 = vmatprep.subr.bf16.mxu0 %v1388
    %1702 = vmatpush1.bf16.msra.mxu0 %v1387
    %1703 = vmatprep.subr.bf16.mxu0 %v1392
    %1704 = vmatpush1.bf16.msra.mxu0 %v1391
    %1705 = vmatprep.subr.bf16.mxu0 %v1396
    %1706 = vmatpush1.bf16.msra.mxu0 %v1395
    %1707 = vmatprep.subr.bf16.mxu0 %v1400
    %1708 = vmatpush1.bf16.msra.mxu0 %v1399
    %1709 = vmatprep.subr.bf16.mxu0 %v1404
    %1710 = vmatpush1.bf16.msra.mxu0 %v1403
    %1711 = vmatprep.mubr.bf16.mxu0 %v805
    %1712 = vmatmul.mubr.bf16.gmra.mrb[0].mxu0 %v804
    %v1713 = vpop.f32.mrb[0].mxu0
    %v1714 = vadd.f32 %v948, %v1713
    %v1715 = vpop.f32.mrb[0].mxu0
    %v1716 = vadd.f32 %v952, %v1715
    %v1717 = vpop.f32.mrb[0].mxu0
    %v1718 = vpop.f32.mrb[0].mxu0
    %1719 = vdwg.mxu0
    %1720 = vmatprep.subr.bf16.mxu0 %v1408
    %1721 = vmatpush1.bf16.msra.mxu0 %v1407
    %1722 = vmatprep.subr.bf16.mxu0 %v1412
    %1723 = vmatpush1.bf16.msra.mxu0 %v1411
    %1724 = vmatprep.subr.bf16.mxu0 %v1416
    %1725 = vmatpush1.bf16.msra.mxu0 %v1415
    %1726 = vmatprep.subr.bf16.mxu0 %v1420
    %1727 = vmatpush1.bf16.msra.mxu0 %v1419
    %1728 = vmatprep.subr.bf16.mxu0 %v1424
    %1729 = vmatpush1.bf16.msra.mxu0 %v1423
    %1730 = vmatprep.subr.bf16.mxu0 %v1428
    %1731 = vmatpush1.bf16.msra.mxu0 %v1427
    %1732 = vmatprep.subr.bf16.mxu0 %v1432
    %1733 = vmatpush1.bf16.msra.mxu0 %v1431
    %1734 = vmatprep.subr.bf16.mxu0 %v1436
    %1735 = vmatpush1.bf16.msra.mxu0 %v1435
    %1736 = vmatprep.subr.bf16.mxu0 %v1440
    %1737 = vmatpush1.bf16.msra.mxu0 %v1439
    %1738 = vmatprep.subr.bf16.mxu0 %v1444
    %1739 = vmatpush1.bf16.msra.mxu0 %v1443
    %1740 = vmatprep.subr.bf16.mxu0 %v1448
    %1741 = vmatpush1.bf16.msra.mxu0 %v1447
    %1742 = vmatprep.subr.bf16.mxu0 %v1452
    %1743 = vmatpush1.bf16.msra.mxu0 %v1451
    %1744 = vmatprep.subr.bf16.mxu0 %v1456
    %1745 = vmatpush1.bf16.msra.mxu0 %v1455
    %1746 = vmatprep.subr.bf16.mxu0 %v1460
    %1747 = vmatpush1.bf16.msra.mxu0 %v1459
    %1748 = vmatprep.subr.bf16.mxu0 %v1464
    %1749 = vmatpush1.bf16.msra.mxu0 %v1463
    %1750 = vmatprep.subr.bf16.mxu0 %v1468
    %1751 = vmatpush1.bf16.msra.mxu0 %v1467
    %1752 = vmatprep.mubr.bf16.mxu0 %v807
    %1753 = vmatmul.mubr.bf16.gmra.mrb[0].mxu0 %v806
    %v1754 = vpop.f32.mrb[0].mxu0
    %v1755 = vadd.f32 %v1714, %v1754
    %v1756 = vpop.f32.mrb[0].mxu0
    %v1757 = vadd.f32 %v1716, %v1756
    %v1758 = vpop.f32.mrb[0].mxu0
    %v1759 = vpop.f32.mrb[0].mxu0
    %1760 = vdwg.mxu0
    %v1761 = vmax.f32 %v1673, 0.0
    %v1762 = vmax.f32 %v1675, 0.0
    %v1763 = vmax.f32 %v1755, 0.0
    %v1764 = vmax.f32 %v1757, 0.0
    %v1765 = vadd.f32 %v1761, %v1762
    %1766 = vadd.xlane.f32.xlu0 %v1765
    %v1767 = vpop.xlane.xlu0 %1766
    %v1768 = vmul.f32 %v1767, %v266
    %v1769 = vmul.f32 %v1761, %v1761
    %v1770 = vmul.f32 %v1762, %v1762
    %v1771 = vadd.f32 %v1769, %v1770
    %1772 = vadd.xlane.f32.xlu0 %v1771
    %v1773 = vpop.xlane.xlu0 %1772
    %v1774 = vmul.f32 %v1773, %v266
    %v1775 = vsub.f32 %v1761, %v1768
    %v1776 = vsub.f32 %v1762, %v1768
    %v1777 = vmul.f32 %v1768, %v1768
    %v1778 = vsub.f32 %v1774, %v1777
    %v1779 = vadd.f32 %v1778, 1e-05
    %v1780 = vrsqrt.pop %v1779
    %v1781 = vmul.f32 %v1775, %v1780
    %v1782 = vmul.f32 %v1776, %v1780
    %v1783 = vadd.f32 %v1763, %v1764
    %1784 = vadd.xlane.f32.xlu0 %v1783
    %v1785 = vpop.xlane.xlu0 %1784
    %v1786 = vmul.f32 %v1785, %v266
    %v1787 = vmul.f32 %v1763, %v1763
    %v1788 = vmul.f32 %v1764, %v1764
    %v1789 = vadd.f32 %v1787, %v1788
    %1790 = vadd.xlane.f32.xlu0 %v1789
    %v1791 = vpop.xlane.xlu0 %1790
    %v1792 = vmul.f32 %v1791, %v266
    %v1793 = vsub.f32 %v1763, %v1786
    %v1794 = vsub.f32 %v1764, %v1786
    %v1795 = vmul.f32 %v1786, %v1786
    %v1796 = vsub.f32 %v1792, %v1795
    %v1797 = vadd.f32 %v1796, 1e-05
    %v1798 = vrsqrt.pop %v1797
    %v1799 = vmul.f32 %v1793, %v1798
    %v1800 = vmul.f32 %v1794, %v1798
    %v1802 = vlaneseq
    %v1803 = vshrl.u32 %v1802, 7
    %v1804 = vsub.s32 0, %v1803
    %v1805 = vrot.slane %v109, %v1804
    %v1806 = vlaneseq
    %v1807 = vshrl.u32 %v1806, 7
    %v1808 = vsub.s32 1, %v1807
    %v1809 = vrot.slane %v109, %v1808
    %v1812 = vmul.f32 %v1781, %v1805
    %v1813 = vmul.f32 %v1782, %v1809
    %v1814 = vadd.f32 %v1812, %v1813
    %1815 = vadd.xlane.f32.xlu0 %v1814
    %v1816 = vpop.xlane.xlu0 %1815
    %v1817 = vadd.f32 %v1816, %v110
    %v1818 = vpack.c.bf16 %v1799, %v1799
    %v1819 = vpack.c.bf16 %v1800, %v1800
    %v1820 = vld [vmem:[#allocation10] sm:$0xf]
    %v1821 = vld [vmem:[#allocation10 + $0x4] sm:$0xf]
    %v1822 = vld [vmem:[#allocation10 + $0x8] sm:$0xf]
    %v1823 = vld [vmem:[#allocation10 + $0xc] sm:$0xf]
    %v1824 = vld [vmem:[#allocation10 + $0x10] sm:$0xf]
    %v1825 = vld [vmem:[#allocation10 + $0x14] sm:$0xf]
    %v1826 = vld [vmem:[#allocation10 + $0x18] sm:$0xf]
    %v1827 = vld [vmem:[#allocation10 + $0x1c] sm:$0xf]
    %v1828 = vld [vmem:[#allocation10 + $0x20] sm:$0xf]
    %v1829 = vld [vmem:[#allocation10 + $0x24] sm:$0xf]
    %v1830 = vld [vmem:[#allocation10 + $0x28] sm:$0xf]
    %v1831 = vld [vmem:[#allocation10 + $0x2c] sm:$0xf]
    %v1832 = vld [vmem:[#allocation10 + $0x30] sm:$0xf]
    %v1833 = vld [vmem:[#allocation10 + $0x34] sm:$0xf]
    %v1834 = vld [vmem:[#allocation10 + $0x38] sm:$0xf]
    %v1835 = vld [vmem:[#allocation10 + $0x3c] sm:$0xf]
    %v1836 = vld [vmem:[#allocation10 + $0x40] sm:$0xf]
    %v1837 = vld [vmem:[#allocation10 + $0x44] sm:$0xf]
    %v1838 = vld [vmem:[#allocation10 + $0x48] sm:$0xf]
    %v1839 = vld [vmem:[#allocation10 + $0x4c] sm:$0xf]
    %v1840 = vld [vmem:[#allocation10 + $0x50] sm:$0xf]
    %v1841 = vld [vmem:[#allocation10 + $0x54] sm:$0xf]
    %v1842 = vld [vmem:[#allocation10 + $0x58] sm:$0xf]
    %v1843 = vld [vmem:[#allocation10 + $0x5c] sm:$0xf]
    %v1844 = vld [vmem:[#allocation10 + $0x60] sm:$0xf]
    %v1845 = vld [vmem:[#allocation10 + $0x64] sm:$0xf]
    %v1846 = vld [vmem:[#allocation10 + $0x68] sm:$0xf]
    %v1847 = vld [vmem:[#allocation10 + $0x6c] sm:$0xf]
    %v1848 = vld [vmem:[#allocation10 + $0x70] sm:$0xf]
    %v1849 = vld [vmem:[#allocation10 + $0x74] sm:$0xf]
    %v1850 = vld [vmem:[#allocation10 + $0x78] sm:$0xf]
    %v1851 = vld [vmem:[#allocation10 + $0x7c] sm:$0xf]
    %v1884 = vunpack.c.l.b16 %v1820
    %v1885 = vunpack.c.l.b16 %v1821
    %v1886 = vunpack.c.l.b16 %v1822
    %v1887 = vunpack.c.l.b16 %v1823
    %v1888 = vunpack.c.l.b16 %v1824
    %v1889 = vunpack.c.l.b16 %v1825
    %v1890 = vunpack.c.l.b16 %v1826
    %v1891 = vunpack.c.l.b16 %v1827
    %v1892 = vunpack.c.l.b16 %v1828
    %v1893 = vunpack.c.l.b16 %v1829
    %v1894 = vunpack.c.l.b16 %v1830
    %v1895 = vunpack.c.l.b16 %v1831
    %v1896 = vunpack.c.l.b16 %v1832
    %v1897 = vunpack.c.l.b16 %v1833
    %v1898 = vunpack.c.l.b16 %v1834
    %v1899 = vunpack.c.l.b16 %v1835
    %v1900 = vunpack.c.l.b16 %v1836
    %v1901 = vunpack.c.l.b16 %v1837
    %v1902 = vunpack.c.l.b16 %v1838
    %v1903 = vunpack.c.l.b16 %v1839
    %v1904 = vunpack.c.l.b16 %v1840
    %v1905 = vunpack.c.l.b16 %v1841
    %v1906 = vunpack.c.l.b16 %v1842
    %v1907 = vunpack.c.l.b16 %v1843
    %v1908 = vunpack.c.l.b16 %v1844
    %v1909 = vunpack.c.l.b16 %v1845
    %v1910 = vunpack.c.l.b16 %v1846
    %v1911 = vunpack.c.l.b16 %v1847
    %v1912 = vunpack.c.l.b16 %v1848
    %v1913 = vunpack.c.l.b16 %v1849
    %v1914 = vunpack.c.l.b16 %v1850
    %v1915 = vunpack.c.l.b16 %v1851
    %v1916 = vpack.c.b16 %v1885, %v1884
    %v1917 = vpack.c.b16 %v1887, %v1886
    %v1918 = vpack.c.b16 %v1889, %v1888
    %v1919 = vpack.c.b16 %v1891, %v1890
    %v1920 = vpack.c.b16 %v1893, %v1892
    %v1921 = vpack.c.b16 %v1895, %v1894
    %v1922 = vpack.c.b16 %v1897, %v1896
    %v1923 = vpack.c.b16 %v1899, %v1898
    %v1924 = vpack.c.b16 %v1901, %v1900
    %v1925 = vpack.c.b16 %v1903, %v1902
    %v1926 = vpack.c.b16 %v1905, %v1904
    %v1927 = vpack.c.b16 %v1907, %v1906
    %v1928 = vpack.c.b16 %v1909, %v1908
    %v1929 = vpack.c.b16 %v1911, %v1910
    %v1930 = vpack.c.b16 %v1913, %v1912
    %v1931 = vpack.c.b16 %v1915, %v1914
    %1948 = vmatprep.subr.bf16.mxu0 0
    %1949 = vmatpush1.bf16.msra.mxu0 %v1916
    %1950 = vmatprep.subr.bf16.mxu0 0
    %1951 = vmatpush1.bf16.msra.mxu0 %v1917
    %1952 = vmatprep.subr.bf16.mxu0 0
    %1953 = vmatpush1.bf16.msra.mxu0 %v1918
    %1954 = vmatprep.subr.bf16.mxu0 0
    %1955 = vmatpush1.bf16.msra.mxu0 %v1919
    %1956 = vmatprep.subr.bf16.mxu0 0
    %1957 = vmatpush1.bf16.msra.mxu0 %v1920
    %1958 = vmatprep.subr.bf16.mxu0 0
    %1959 = vmatpush1.bf16.msra.mxu0 %v1921
    %1960 = vmatprep.subr.bf16.mxu0 0
    %1961 = vmatpush1.bf16.msra.mxu0 %v1922
    %1962 = vmatprep.subr.bf16.mxu0 0
    %1963 = vmatpush1.bf16.msra.mxu0 %v1923
    %1964 = vmatprep.subr.bf16.mxu0 0
    %1965 = vmatpush1.bf16.msra.mxu0 %v1924
    %1966 = vmatprep.subr.bf16.mxu0 0
    %1967 = vmatpush1.bf16.msra.mxu0 %v1925
    %1968 = vmatprep.subr.bf16.mxu0 0
    %1969 = vmatpush1.bf16.msra.mxu0 %v1926
    %1970 = vmatprep.subr.bf16.mxu0 0
    %1971 = vmatpush1.bf16.msra.mxu0 %v1927
    %1972 = vmatprep.subr.bf16.mxu0 0
    %1973 = vmatpush1.bf16.msra.mxu0 %v1928
    %1974 = vmatprep.subr.bf16.mxu0 0
    %1975 = vmatpush1.bf16.msra.mxu0 %v1929
    %1976 = vmatprep.subr.bf16.mxu0 0
    %1977 = vmatpush1.bf16.msra.mxu0 %v1930
    %1978 = vmatprep.subr.bf16.mxu0 0
    %1979 = vmatpush1.bf16.msra.mxu0 %v1931
    %1980 = vmatprep.mubr.bf16.mxu0 %v1819
    %1981 = vmatmul.mubr.bf16.gmra.mrb[0].mxu0 %v1818
    %v1982 = vpop.f32.mrb[0].mxu0
    %v1983 = vadd.f32 %v111, %v1982
    %v1984 = vpop.f32.mrb[0].mxu0
    %v1985 = vpop.f32.mrb[0].mxu0
    %v1986 = vpop.f32.mrb[0].mxu0
    %1987 = vdwg.mxu0
    %1989 = vset.pattern.permute.xlu0 0
    %1990 = vperm.xlu0 %1989, %v1817
    %v1991 = vpop.permute.xlu0 %1990
    %v1993 = vadd.f32 %v1991, %v1983
    %1994 = vst [vmem:[#allocation13] sm:$0xff] %v1993
    // Predicated region
    $region50: #{tpu_custom_call.1} parent=1 // pred_check
      _
    $region51: #{tpu_custom_call.1} parent=1 // pred_check_branch
      %1996 = sbr.rel (0) target = $region53
    $region52: #{tpu_custom_call.1} parent=1 // pred_region
      %s1998 = ssub.s32 128, 128
      %1999 = vsyncadd [#allocation4], %s1998
      %s2001 = sshll.u32 [#allocation13], 4
      %s2002 = int_to_ptr.vmem [resolvable:$true] %s2001
      %2004 = dma.vmem_to_hbm [thread:$0]  %s2002, 128, %s6, [#allocation4]
    $region53: #{tpu_custom_call.1} parent=1 // pred_fallthru
      _
    // Predicated region
    $region54: #{tpu_custom_call.1} parent=1 // pred_check
      _
    $region55: #{tpu_custom_call.1} parent=1 // pred_check_branch
      %2006 = sbr.rel (0) target = $region57
    $region56: #{tpu_custom_call.1} parent=1 // pred_region
      %2007 = dma.done [#allocation4], 128
    $region57: #{tpu_custom_call.1} parent=1 // pred_fallthru
      _
    %2008 = vsyncpa [#allocation3], 1
    %2009 = vsyncpa [#allocation6], 1
    %2010 = vsyncpa [#allocation9], 1
    %2011 = vsyncpa [#allocation12], 1
    %2012 = vsyncpa [#allocation4], 1

</llo_original>
